<compile_context>
chip_gen: v7x
topology: tpu7x:2x2x1
jax: 0.10.0
libtpu: 0.0.40
codegen_flags: <defaults>
</compile_context>

<pallas_src>
import functools

import jax
import jax.numpy as jnp
from jax import lax
from jax.experimental import pallas as pl
from jax.experimental.pallas import tpu as pltpu


def _round_up(x, m):
    return (x + m - 1) // m * m


def _use_bf16_eup():
    """bf16 transcendentals only where the EUP supports them (v6e / v7x)."""
    try:
        kind = jax.devices()[0].device_kind.lower()
    except Exception:
        return False
    return ("v6" in kind) or ("v7" in kind)


def _pick_time_chunk(T, bt, K_p, H_p, budget_bytes=12 << 20):
    # Per-timestep chunk cost: x (bf16, double-buffered) + xg scratch (bf16).
    per_t = bt * (2 * 2 * K_p + 2 * 4 * H_p)
    tc = max(1, min(T, budget_bytes // max(per_t, 1)))
    return int(min(tc, 512))


def _vmem_limit_bytes(tc, bt, K_p, H_p, O_p):
    weights = 2 * ((K_p * 4 * H_p + H_p * 4 * H_p + H_p * O_p) * 2
                   + (4 * H_p + O_p) * 4)
    x_chunk = 2 * tc * bt * K_p * 2          # double-buffered bf16
    xg = tc * bt * 4 * H_p * 2               # bf16 scratch
    state = 2 * bt * H_p * 4                 # h, c f32
    out = 2 * bt * O_p * 4
    est = weights + x_chunk + xg + state + out + (4 << 20)
    return int(min(max(est, 16 << 20), 48 << 20))


def _lstm_kernel(x_ref, wih_ref, whh_ref, b_ref, wro_ref, bro_ref,
                 out_ref, xg_ref, h_ref, c_ref,
                 *, time_chunk, batch_tile, hidden, seq_len, seq_len_padded,
                 unroll, bf16_act):
    """One (batch_tile, time_chunk) grid step of the LSTM forward.

    x_ref   : (tc, bt, K_p) bf16  current time-chunk of inputs
    wih_ref : (K_p, 4H)     bf16  input->gates (gate blocks lane-aligned at H)
    whh_ref : (H, 4H)       bf16  hidden->gates
    b_ref   : (1, 4H)       f32   b_ih + b_hh (zero in padded hidden lanes)
    wro_ref : (H, O)        bf16  readout weight
    bro_ref : (1, O)        f32   readout bias (-1e30 in padded class lanes)
    out_ref : (bt, O)       f32   log-probabilities (written on last chunk)
    xg_ref  : (tc*bt, 4H)   bf16  scratch: per-chunk input projection
    h_ref   : (bt, H)       f32   scratch: hidden state carried across chunks
    c_ref   : (bt, H)       f32   scratch: cell state carried across chunks
    """
    tc, bt, H = time_chunk, batch_tile, hidden
    t_chunk = pl.program_id(1)
    n_chunks = pl.num_programs(1)

    @pl.when(t_chunk == 0)
    def _():
        h_ref[...] = jnp.zeros_like(h_ref)
        c_ref[...] = jnp.zeros_like(c_ref)

    # 1) Input projection for the whole chunk: one dense MXU matmul, stored
    #    in bf16 (f32 accumulation, rounded once).
    k_dim = x_ref.shape[-1]
    x_flat = x_ref[...].reshape(tc * bt, k_dim)
    xg_ref[...] = jnp.dot(x_flat, wih_ref[...],
                          preferred_element_type=jnp.float32).astype(jnp.bfloat16)

    # Hoisted f32 bias broadcast (added back in f32 inside the step).
    bias = jnp.broadcast_to(b_ref[...], (bt, 4 * H))

    # 2) Serial recurrence: only h @ W_hh per step.
    def step(i, carry):
        h, c = carry
        row = pl.multiple_of(i * bt, bt)
        gates = (xg_ref[pl.ds(row, bt), :].astype(jnp.float32) + bias
                 + jnp.dot(h.astype(jnp.bfloat16), whh_ref[...],
                           preferred_element_type=jnp.float32))       # (bt,4H) f32
        ga = gates.astype(jnp.bfloat16) if bf16_act else gates
        # Lane-aligned gate slices (H is a multiple of 128).
        i_g = jax.nn.sigmoid(ga[:, 0 * H:1 * H])
        f_g = jax.nn.sigmoid(ga[:, 1 * H:2 * H])
        g_g = jnp.tanh(ga[:, 2 * H:3 * H])
        o_g = jax.nn.sigmoid(ga[:, 3 * H:4 * H])
        c_new = f_g * c + i_g * g_g
        h_new = o_g * jnp.tanh(c_new)
        if seq_len_padded > seq_len:
            valid = (t_chunk * tc + i) < seq_len
            h_new = jnp.where(valid, h_new, h)
            c_new = jnp.where(valid, c_new, c)
        return h_new.astype(jnp.float32), c_new.astype(jnp.float32)

    h0 = h_ref[...]
    c0 = c_ref[...]
    h_fin, c_fin = lax.fori_loop(0, tc, step, (h0, c0), unroll=unroll)
    h_ref[...] = h_fin
    c_ref[...] = c_fin

    # 3) Readout + log_softmax, last chunk only.  Padded class lanes carry a
    #    -1e30 f32 bias so exp() underflows to 0 and the normalizer is exact.
    @pl.when(t_chunk == n_chunks - 1)
    def _():
        logits = (jnp.dot(h_fin.astype(jnp.bfloat16), wro_ref[...],
                          preferred_element_type=jnp.float32) + bro_ref[...])
        m = jnp.max(logits, axis=1, keepdims=True)
        z = logits - m
        lse = jnp.log(jnp.sum(jnp.exp(z), axis=1, keepdims=True))
        out_ref[...] = (z - lse).astype(out_ref.dtype)


def preprocess_params(params):
    """One-time padding/transposition of the weights (hoisted off the fwd path)."""
    w_ih, w_hh = params["w_ih"], params["w_hh"]
    b_ih, b_hh = params["b_ih"], params["b_hh"]
    w_ro, b_ro = params["w_ro"], params["b_ro"]
    H = w_hh.shape[1]
    n_input = w_ih.shape[1]
    n_output = w_ro.shape[0]

    K_p = _round_up(n_input, 128)
    H_p = _round_up(H, 128)
    O_p = _round_up(n_output, 128)
    bf16 = jnp.bfloat16

    # Gate g occupies columns [g*H_p, g*H_p + H).  Padded hidden lanes get zero
    # weights & bias => padded h/c stay exactly 0 through the recurrence.
    def pad_gates(w_t, rows, rows_p, dtype):
        out = jnp.zeros((rows_p, 4 * H_p), dtype)
        for g in range(4):
            out = out.at[:rows, g * H_p:g * H_p + H].set(
                w_t[:, g * H:(g + 1) * H].astype(dtype))
        return out

    wih_p = pad_gates(jnp.transpose(w_ih), n_input, K_p, bf16)            # (K_p, 4H_p)
    whh_p = pad_gates(jnp.transpose(w_hh), H, H_p, bf16)                  # (H_p, 4H_p)
    b_p = pad_gates((b_ih + b_hh).reshape(1, 4 * H), 1, 1, jnp.float32)   # (1, 4H_p)

    wro_p = jnp.zeros((H_p, O_p), bf16).at[:H, :n_output].set(
        jnp.transpose(w_ro).astype(bf16))                                 # (H_p, O_p)
    # NOTE: logits stay f32 in the kernel; the -1e30 sentinel would overflow
    # if this path were ever switched to bf16.
    bro_p = jnp.full((1, O_p), -1e30, jnp.float32).at[0, :n_output].set(
        b_ro.astype(jnp.float32))                                         # (1, O_p)

    return {"wih": wih_p, "whh": whh_p, "b": b_p, "wro": wro_p, "bro": bro_p,
            "n_input": n_input, "hidden": H, "n_output": n_output,
            "K_p": K_p, "H_p": H_p, "O_p": O_p}


def lstm_model_forward(x, packed, *, time_chunk=None, bf16_activations=None):
    """x: (T, B, n_input) float32, packed = preprocess_params(raw_params).
    Returns (B, n_output) log-probabilities."""
    T, B, n_input = x.shape
    assert n_input == packed["n_input"]
    K_p, H_p, O_p = packed["K_p"], packed["H_p"], packed["O_p"]
    n_output = packed["n_output"]
    bf16 = jnp.bfloat16

    # bf16 sublane packing => pad batch to a multiple of 16.
    bt = min(128, _round_up(max(B, 16), 16))
    B_p = _round_up(max(B, bt), bt)
    n_btiles = B_p // bt

    if bf16_activations is None:
        bf16_activations = _use_bf16_eup()
    if time_chunk is None:
        time_chunk = _pick_time_chunk(T, bt, K_p, H_p)
    tc = max(1, min(int(time_chunk), T))
    n_chunks = -(-T // tc)
    T_pad = n_chunks * tc

    # Per-call input padding only (weights were padded once in preprocess).
    x_p = jnp.zeros((T_pad, B_p, K_p), bf16).at[:T, :B, :n_input].set(
        x.astype(bf16))

    kernel = functools.partial(
        _lstm_kernel, time_chunk=tc, batch_tile=bt, hidden=H_p,
        seq_len=T, seq_len_padded=T_pad, unroll=min(tc, 8),
        bf16_act=bool(bf16_activations))

    out_p = pl.pallas_call(
        kernel,
        out_shape=jax.ShapeDtypeStruct((B_p, O_p), jnp.float32),
        grid_spec=pltpu.PrefetchScalarGridSpec(
            num_scalar_prefetch=0,
            grid=(n_btiles, n_chunks),
            in_specs=[
                pl.BlockSpec((tc, bt, K_p), lambda b, t: (t, b, 0)),   # x chunk
                pl.BlockSpec((K_p, 4 * H_p), lambda b, t: (0, 0)),     # W_ih
                pl.BlockSpec((H_p, 4 * H_p), lambda b, t: (0, 0)),     # W_hh
                pl.BlockSpec((1, 4 * H_p), lambda b, t: (0, 0)),       # bias
                pl.BlockSpec((H_p, O_p), lambda b, t: (0, 0)),         # W_ro
                pl.BlockSpec((1, O_p), lambda b, t: (0, 0)),           # b_ro
            ],
            out_specs=pl.BlockSpec((bt, O_p), lambda b, t: (b, 0)),
            scratch_shapes=[
                pltpu.VMEM((tc * bt, 4 * H_p), bf16),    # xg (input projection)
                pltpu.VMEM((bt, H_p), jnp.float32),      # h
                pltpu.VMEM((bt, H_p), jnp.float32),      # c
            ],
        ),
        compiler_params=pltpu.CompilerParams(
            dimension_semantics=("parallel", "arbitrary"),
            vmem_limit_bytes=_vmem_limit_bytes(tc, bt, K_p, H_p, O_p),
        ),
    )(x_p, packed["wih"], packed["whh"], packed["b"],
      packed["wro"], packed["bro"])

    return out_p[:B, :n_output]


def init_params(key, n_input, n_features, n_output):
    """Deterministic PyTorch-style uniform(-1/sqrt(H), 1/sqrt(H)) init."""
    H = n_features
    k = 1.0 / jnp.sqrt(jnp.float32(H))
    keys = jax.random.split(key, 6)
    u = lambda kk, shape: jax.random.uniform(kk, shape, jnp.float32, -k, k)
    return {
        "w_ih": u(keys[0], (4 * H, n_input)),
        "w_hh": u(keys[1], (4 * H, H)),
        "b_ih": u(keys[2], (4 * H,)),
        "b_hh": u(keys[3], (4 * H,)),
        "w_ro": u(keys[4], (n_output, H)),
        "b_ro": u(keys[5], (n_output,)),
    }


def _reference_forward_f32(x, params):
    """Pure-JAX f32 reference of the PyTorch module."""
    T, B, _ = x.shape
    H = params["w_hh"].shape[1]
    h = jnp.zeros((B, H), jnp.float32)
    c = jnp.zeros((B, H), jnp.float32)
    b = params["b_ih"] + params["b_hh"]
    for t in range(T):
        gates = x[t] @ params["w_ih"].T + h @ params["w_hh"].T + b
        i = jax.nn.sigmoid(gates[:, 0 * H:1 * H])
        f = jax.nn.sigmoid(gates[:, 1 * H:2 * H])
        g = jnp.tanh(gates[:, 2 * H:3 * H])
        o = jax.nn.sigmoid(gates[:, 3 * H:4 * H])
        c = f * c + i * g
        h = o * jnp.tanh(c)
    logits = h @ params["w_ro"].T + params["b_ro"]
    return jax.nn.log_softmax(logits, axis=1)


def _reference_forward_matched(x, params, *, bf16_act):
    """Reference mirroring the kernel's mixed precision (bf16 MXU operands,
    bf16 xg, f32 state, optional bf16 gate activations)."""
    bf16 = jnp.bfloat16
    T, B, n_input = x.shape
    H = params["w_hh"].shape[1]
    wih = jnp.transpose(params["w_ih"]).astype(bf16)
    whh = jnp.transpose(params["w_hh"]).astype(bf16)
    wro = jnp.transpose(params["w_ro"]).astype(bf16)
    b = (params["b_ih"] + params["b_hh"]).astype(jnp.float32)
    xg = jnp.dot(x.astype(bf16).reshape(T * B, n_input), wih,
                 preferred_element_type=jnp.float32).astype(bf16)
    xg = xg.reshape(T, B, 4 * H)
    h = jnp.zeros((B, H), jnp.float32)
    c = jnp.zeros((B, H), jnp.float32)
    for t in range(T):
        gates = (xg[t].astype(jnp.float32) + b
                 + jnp.dot(h.astype(bf16), whh, preferred_element_type=jnp.float32))
        ga = gates.astype(bf16) if bf16_act else gates
        i = jax.nn.sigmoid(ga[:, 0 * H:1 * H])
        f = jax.nn.sigmoid(ga[:, 1 * H:2 * H])
        g = jnp.tanh(ga[:, 2 * H:3 * H])
        o = jax.nn.sigmoid(ga[:, 3 * H:4 * H])
        c = (f * c + i * g).astype(jnp.float32)
        h = (o * jnp.tanh(c)).astype(jnp.float32)
    logits = jnp.dot(h.astype(bf16), wro,
                     preferred_element_type=jnp.float32) + params["b_ro"]
    return jax.nn.log_softmax(logits, axis=1)


if __name__ == "__main__":
    # Small shapes consistent with the module's forward: x is (seq, batch, n_input).
    T, B = 8, 4
    n_input, n_features, n_output = 16, 32, 10

    key = jax.random.PRNGKey(0)
    k_x, k_p = jax.random.split(key)
    x = jax.random.normal(k_x, (T, B, n_input), jnp.float32)
    params = init_params(k_p, n_input, n_features, n_output)
    packed = preprocess_params(params)

    bf16_act = _use_bf16_eup()
    # time_chunk=3 forces 3 time chunks (with one masked pad step) so the
    # cross-chunk h/c carry and the tail masking are both exercised.
    out = jax.block_until_ready(
        lstm_model_forward(x, packed, time_chunk=3, bf16_activations=bf16_act))
    assert out.shape == (B, n_output)

    # Check against a reference that mirrors the kernel's mixed precision.
    ref_mm = _reference_forward_matched(x, params, bf16_act=bf16_act)
    assert jnp.allclose(out, ref_mm, atol=3e-2, rtol=0.0), \
        "mismatch vs precision-matched reference"

    # Loose sanity check against the pure-f32 reference (bf16 rounding only).
    ref_f32 = _reference_forward_f32(x, params)
    assert jnp.allclose(out, ref_f32, atol=8e-2, rtol=0.0), \
        "mismatch vs f32 reference"

    print("KERNEL_OK")
</pallas_src>

<mosaic_0001>
module attributes {stable_mosaic.version = 11 : i64} {
  func.func @_lstm_kernel(%arg0: i32, %arg1: i32, %arg2: memref<3x16x128xbf16, #tpu.memory_space<vmem>>, %arg3: memref<128x512xbf16, #tpu.memory_space<vmem>>, %arg4: memref<128x512xbf16, #tpu.memory_space<vmem>>, %arg5: memref<1x512xf32, #tpu.memory_space<vmem>>, %arg6: memref<128x128xbf16, #tpu.memory_space<vmem>>, %arg7: memref<1x128xf32, #tpu.memory_space<vmem>>, %arg8: memref<16x128xf32, #tpu.memory_space<vmem>>, %arg9: memref<48x512xbf16, #tpu.memory_space<vmem>>, %arg10: memref<16x128xf32, #tpu.memory_space<vmem>>, %arg11: memref<16x128xf32, #tpu.memory_space<vmem>>) attributes {dimension_semantics = [#tpu.dimension_semantics<parallel>, #tpu.dimension_semantics<arbitrary>], iteration_bounds = array<i64: 1, 3>, scalar_prefetch = 0 : i64, scratch_operands = 3 : i64, tpu.core_type = #tpu.core_type<tc>, window_params = [{transform_indices = @transform_0, window_bounds = array<i64: 3, 16, 128>}, {pipeline_mode = #tpu.pipeline_mode<synchronous>, transform_indices = @transform_1, window_bounds = array<i64: 128, 512>}, {pipeline_mode = #tpu.pipeline_mode<synchronous>, transform_indices = @transform_2, window_bounds = array<i64: 128, 512>}, {pipeline_mode = #tpu.pipeline_mode<synchronous>, transform_indices = @transform_3, window_bounds = array<i64: 1, 512>}, {pipeline_mode = #tpu.pipeline_mode<synchronous>, transform_indices = @transform_4, window_bounds = array<i64: 128, 128>}, {pipeline_mode = #tpu.pipeline_mode<synchronous>, transform_indices = @transform_5, window_bounds = array<i64: 1, 128>}, {transform_indices = @transform_6, window_bounds = array<i64: 16, 128>}]} {
    %c0_i32 = arith.constant 0 : i32
    %0 = arith.cmpi eq, %arg1, %c0_i32 : i32
    %1 = arith.extui %0 : i1 to i32
    %c0_i32_0 = arith.constant 0 : i32
    %2 = arith.cmpi ne, %1, %c0_i32_0 : i32
    scf.if %2 {
      %cst_48 = arith.constant 0.000000e+00 : f32
      %139 = vector.broadcast %cst_48 : f32 to vector<16x128xf32>
      %c0_49 = arith.constant 0 : index
      %c0_50 = arith.constant 0 : index
      %140 = vector.load %arg10[%c0_49, %c0_50] : memref<16x128xf32, #tpu.memory_space<vmem>>, vector<16x128xf32>
      tpu.vector_store %arg10[%c0_49, %c0_50], %139 {strides = array<i32>} : memref<16x128xf32, #tpu.memory_space<vmem>>, vector<16x128xf32>,
      %cst_51 = arith.constant 0.000000e+00 : f32
      %141 = vector.broadcast %cst_51 : f32 to vector<16x128xf32>
      %c0_52 = arith.constant 0 : index
      %c0_53 = arith.constant 0 : index
      %142 = vector.load %arg11[%c0_52, %c0_53] : memref<16x128xf32, #tpu.memory_space<vmem>>, vector<16x128xf32>
      tpu.vector_store %arg11[%c0_52, %c0_53], %141 {strides = array<i32>} : memref<16x128xf32, #tpu.memory_space<vmem>>, vector<16x128xf32>,
    } else {
    }
    %c0 = arith.constant 0 : index
    %c0_1 = arith.constant 0 : index
    %c0_2 = arith.constant 0 : index
    %3 = vector.load %arg2[%c0, %c0_1, %c0_2] : memref<3x16x128xbf16, #tpu.memory_space<vmem>>, vector<3x16x128xbf16>
    %4 = vector.shape_cast %3 : vector<3x16x128xbf16> to vector<48x128xbf16>
    %c0_3 = arith.constant 0 : index
    %c0_4 = arith.constant 0 : index
    %5 = vector.load %arg3[%c0_3, %c0_4] : memref<128x512xbf16, #tpu.memory_space<vmem>>, vector<128x512xbf16>
    %cst = arith.constant dense<0.000000e+00> : vector<48x512xf32>
    %6 = tpu.matmul %4, %5, %cst {dimension_numbers = #tpu.dot_dimension_numbers<[1], [0], [0], [1], [0, 0, 1, 1], [], []>} : vector<48x128xbf16>, vector<128x512xbf16>, vector<48x512xf32> -> vector<48x512xf32>
    %7 = arith.truncf %6 : vector<48x512xf32> to vector<48x512xbf16>
    %c0_5 = arith.constant 0 : index
    %c0_6 = arith.constant 0 : index
    %8 = vector.load %arg9[%c0_5, %c0_6] : memref<48x512xbf16, #tpu.memory_space<vmem>>, vector<48x512xbf16>
    tpu.vector_store %arg9[%c0_5, %c0_6], %7 {strides = array<i32>} : memref<48x512xbf16, #tpu.memory_space<vmem>>, vector<48x512xbf16>,
    %c0_7 = arith.constant 0 : index
    %c0_8 = arith.constant 0 : index
    %9 = vector.load %arg5[%c0_7, %c0_8] : memref<1x512xf32, #tpu.memory_space<vmem>>, vector<1x512xf32>
    %10 = vector.shape_cast %9 : vector<1x512xf32> to vector<1x512xf32>
    %11 = vector.broadcast %10 : vector<1x512xf32> to vector<16x512xf32>
    %c0_9 = arith.constant 0 : index
    %c0_10 = arith.constant 0 : index
    %12 = vector.load %arg10[%c0_9, %c0_10] : memref<16x128xf32, #tpu.memory_space<vmem>>, vector<16x128xf32>
    %c0_11 = arith.constant 0 : index
    %c0_12 = arith.constant 0 : index
    %13 = vector.load %arg11[%c0_11, %c0_12] : memref<16x128xf32, #tpu.memory_space<vmem>>, vector<16x128xf32>
    %c0_i32_13 = arith.constant 0 : i32
    %c16_i32 = arith.constant 16 : i32
    %14 = arith.muli %c0_i32_13, %c16_i32 : i32
    %15 = tpu.assume_multiple %14, 16 : i32
    %16 = arith.index_cast %15 : i32 to index
    %c0_14 = arith.constant 0 : index
    %17 = vector.load %arg9[%16, %c0_14] : memref<48x512xbf16, #tpu.memory_space<vmem>>, vector<16x512xbf16>
    %18 = arith.extf %17 : vector<16x512xbf16> to vector<16x512xf32>
    %19 = arith.addf %18, %11 : vector<16x512xf32>
    %20 = arith.truncf %12 : vector<16x128xf32> to vector<16x128xbf16>
    %c0_15 = arith.constant 0 : index
    %c0_16 = arith.constant 0 : index
    %21 = vector.load %arg4[%c0_15, %c0_16] : memref<128x512xbf16, #tpu.memory_space<vmem>>, vector<128x512xbf16>
    %cst_17 = arith.constant dense<0.000000e+00> : vector<16x512xf32>
    %22 = tpu.matmul %20, %21, %cst_17 {dimension_numbers = #tpu.dot_dimension_numbers<[1], [0], [0], [1], [0, 0, 1, 1], [], []>} : vector<16x128xbf16>, vector<128x512xbf16>, vector<16x512xf32> -> vector<16x512xf32>
    %23 = arith.addf %19, %22 : vector<16x512xf32>
    %24 = vector.extract_strided_slice %23 {offsets = [0, 0], sizes = [16, 128], strides = [1, 1]} : vector<16x512xf32> to vector<16x128xf32>
    %25 = arith.negf %24 : vector<16x128xf32>
    %26 = math.exp %25 : vector<16x128xf32>
    %cst_18 = arith.constant 1.000000e+00 : f32
    %27 = vector.broadcast %cst_18 : f32 to vector<16x128xf32>
    %28 = arith.addf %27, %26 : vector<16x128xf32>
    %29 = arith.divf %27, %28 : vector<16x128xf32>
    %30 = vector.extract_strided_slice %23 {offsets = [0, 128], sizes = [16, 128], strides = [1, 1]} : vector<16x512xf32> to vector<16x128xf32>
    %31 = arith.negf %30 : vector<16x128xf32>
    %32 = math.exp %31 : vector<16x128xf32>
    %cst_19 = arith.constant 1.000000e+00 : f32
    %33 = vector.broadcast %cst_19 : f32 to vector<16x128xf32>
    %34 = arith.addf %33, %32 : vector<16x128xf32>
    %35 = arith.divf %33, %34 : vector<16x128xf32>
    %36 = vector.extract_strided_slice %23 {offsets = [0, 256], sizes = [16, 128], strides = [1, 1]} : vector<16x512xf32> to vector<16x128xf32>
    %37 = math.tanh %36 : vector<16x128xf32>
    %38 = vector.extract_strided_slice %23 {offsets = [0, 384], sizes = [16, 128], strides = [1, 1]} : vector<16x512xf32> to vector<16x128xf32>
    %39 = arith.negf %38 : vector<16x128xf32>
    %40 = math.exp %39 : vector<16x128xf32>
    %cst_20 = arith.constant 1.000000e+00 : f32
    %41 = vector.broadcast %cst_20 : f32 to vector<16x128xf32>
    %42 = arith.addf %41, %40 : vector<16x128xf32>
    %43 = arith.divf %41, %42 : vector<16x128xf32>
    %44 = arith.mulf %35, %13 : vector<16x128xf32>
    %45 = arith.mulf %29, %37 : vector<16x128xf32>
    %46 = arith.addf %44, %45 : vector<16x128xf32>
    %47 = math.tanh %46 : vector<16x128xf32>
    %48 = arith.mulf %43, %47 : vector<16x128xf32>
    %c3_i32 = arith.constant 3 : i32
    %49 = arith.muli %arg1, %c3_i32 : i32
    %50 = arith.addi %49, %c0_i32_13 : i32
    %c8_i32 = arith.constant 8 : i32
    %51 = arith.cmpi slt, %50, %c8_i32 : i32
    %52 = arith.select %51, %48, %12 : vector<16x128xf32>
    %53 = arith.select %51, %46, %13 : vector<16x128xf32>
    %c1_i32 = arith.constant 1 : i32
    %c16_i32_21 = arith.constant 16 : i32
    %54 = arith.muli %c1_i32, %c16_i32_21 : i32
    %55 = tpu.assume_multiple %54, 16 : i32
    %56 = arith.index_cast %55 : i32 to index
    %c0_22 = arith.constant 0 : index
    %57 = vector.load %arg9[%56, %c0_22] : memref<48x512xbf16, #tpu.memory_space<vmem>>, vector<16x512xbf16>
    %58 = arith.extf %57 : vector<16x512xbf16> to vector<16x512xf32>
    %59 = arith.addf %58, %11 : vector<16x512xf32>
    %60 = arith.truncf %52 : vector<16x128xf32> to vector<16x128xbf16>
    %c0_23 = arith.constant 0 : index
    %c0_24 = arith.constant 0 : index
    %61 = vector.load %arg4[%c0_23, %c0_24] : memref<128x512xbf16, #tpu.memory_space<vmem>>, vector<128x512xbf16>
    %cst_25 = arith.constant dense<0.000000e+00> : vector<16x512xf32>
    %62 = tpu.matmul %60, %61, %cst_25 {dimension_numbers = #tpu.dot_dimension_numbers<[1], [0], [0], [1], [0, 0, 1, 1], [], []>} : vector<16x128xbf16>, vector<128x512xbf16>, vector<16x512xf32> -> vector<16x512xf32>
    %63 = arith.addf %59, %62 : vector<16x512xf32>
    %64 = vector.extract_strided_slice %63 {offsets = [0, 0], sizes = [16, 128], strides = [1, 1]} : vector<16x512xf32> to vector<16x128xf32>
    %65 = arith.negf %64 : vector<16x128xf32>
    %66 = math.exp %65 : vector<16x128xf32>
    %cst_26 = arith.constant 1.000000e+00 : f32
    %67 = vector.broadcast %cst_26 : f32 to vector<16x128xf32>
    %68 = arith.addf %67, %66 : vector<16x128xf32>
    %69 = arith.divf %67, %68 : vector<16x128xf32>
    %70 = vector.extract_strided_slice %63 {offsets = [0, 128], sizes = [16, 128], strides = [1, 1]} : vector<16x512xf32> to vector<16x128xf32>
    %71 = arith.negf %70 : vector<16x128xf32>
    %72 = math.exp %71 : vector<16x128xf32>
    %cst_27 = arith.constant 1.000000e+00 : f32
    %73 = vector.broadcast %cst_27 : f32 to vector<16x128xf32>
    %74 = arith.addf %73, %72 : vector<16x128xf32>
    %75 = arith.divf %73, %74 : vector<16x128xf32>
    %76 = vector.extract_strided_slice %63 {offsets = [0, 256], sizes = [16, 128], strides = [1, 1]} : vector<16x512xf32> to vector<16x128xf32>
    %77 = math.tanh %76 : vector<16x128xf32>
    %78 = vector.extract_strided_slice %63 {offsets = [0, 384], sizes = [16, 128], strides = [1, 1]} : vector<16x512xf32> to vector<16x128xf32>
    %79 = arith.negf %78 : vector<16x128xf32>
    %80 = math.exp %79 : vector<16x128xf32>
    %cst_28 = arith.constant 1.000000e+00 : f32
    %81 = vector.broadcast %cst_28 : f32 to vector<16x128xf32>
    %82 = arith.addf %81, %80 : vector<16x128xf32>
    %83 = arith.divf %81, %82 : vector<16x128xf32>
    %84 = arith.mulf %75, %53 : vector<16x128xf32>
    %85 = arith.mulf %69, %77 : vector<16x128xf32>
    %86 = arith.addf %84, %85 : vector<16x128xf32>
    %87 = math.tanh %86 : vector<16x128xf32>
    %88 = arith.mulf %83, %87 : vector<16x128xf32>
    %c3_i32_29 = arith.constant 3 : i32
    %89 = arith.muli %arg1, %c3_i32_29 : i32
    %90 = arith.addi %89, %c1_i32 : i32
    %c8_i32_30 = arith.constant 8 : i32
    %91 = arith.cmpi slt, %90, %c8_i32_30 : i32
    %92 = arith.select %91, %88, %52 : vector<16x128xf32>
    %93 = arith.select %91, %86, %53 : vector<16x128xf32>
    %c2_i32 = arith.constant 2 : i32
    %c16_i32_31 = arith.constant 16 : i32
    %94 = arith.muli %c2_i32, %c16_i32_31 : i32
    %95 = tpu.assume_multiple %94, 16 : i32
    %96 = arith.index_cast %95 : i32 to index
    %c0_32 = arith.constant 0 : index
    %97 = vector.load %arg9[%96, %c0_32] : memref<48x512xbf16, #tpu.memory_space<vmem>>, vector<16x512xbf16>
    %98 = arith.extf %97 : vector<16x512xbf16> to vector<16x512xf32>
    %99 = arith.addf %98, %11 : vector<16x512xf32>
    %100 = arith.truncf %92 : vector<16x128xf32> to vector<16x128xbf16>
    %c0_33 = arith.constant 0 : index
    %c0_34 = arith.constant 0 : index
    %101 = vector.load %arg4[%c0_33, %c0_34] : memref<128x512xbf16, #tpu.memory_space<vmem>>, vector<128x512xbf16>
    %cst_35 = arith.constant dense<0.000000e+00> : vector<16x512xf32>
    %102 = tpu.matmul %100, %101, %cst_35 {dimension_numbers = #tpu.dot_dimension_numbers<[1], [0], [0], [1], [0, 0, 1, 1], [], []>} : vector<16x128xbf16>, vector<128x512xbf16>, vector<16x512xf32> -> vector<16x512xf32>
    %103 = arith.addf %99, %102 : vector<16x512xf32>
    %104 = vector.extract_strided_slice %103 {offsets = [0, 0], sizes = [16, 128], strides = [1, 1]} : vector<16x512xf32> to vector<16x128xf32>
    %105 = arith.negf %104 : vector<16x128xf32>
    %106 = math.exp %105 : vector<16x128xf32>
    %cst_36 = arith.constant 1.000000e+00 : f32
    %107 = vector.broadcast %cst_36 : f32 to vector<16x128xf32>
    %108 = arith.addf %107, %106 : vector<16x128xf32>
    %109 = arith.divf %107, %108 : vector<16x128xf32>
    %110 = vector.extract_strided_slice %103 {offsets = [0, 128], sizes = [16, 128], strides = [1, 1]} : vector<16x512xf32> to vector<16x128xf32>
    %111 = arith.negf %110 : vector<16x128xf32>
    %112 = math.exp %111 : vector<16x128xf32>
    %cst_37 = arith.constant 1.000000e+00 : f32
    %113 = vector.broadcast %cst_37 : f32 to vector<16x128xf32>
    %114 = arith.addf %113, %112 : vector<16x128xf32>
    %115 = arith.divf %113, %114 : vector<16x128xf32>
    %116 = vector.extract_strided_slice %103 {offsets = [0, 256], sizes = [16, 128], strides = [1, 1]} : vector<16x512xf32> to vector<16x128xf32>
    %117 = math.tanh %116 : vector<16x128xf32>
    %118 = vector.extract_strided_slice %103 {offsets = [0, 384], sizes = [16, 128], strides = [1, 1]} : vector<16x512xf32> to vector<16x128xf32>
    %119 = arith.negf %118 : vector<16x128xf32>
    %120 = math.exp %119 : vector<16x128xf32>
    %cst_38 = arith.constant 1.000000e+00 : f32
    %121 = vector.broadcast %cst_38 : f32 to vector<16x128xf32>
    %122 = arith.addf %121, %120 : vector<16x128xf32>
    %123 = arith.divf %121, %122 : vector<16x128xf32>
    %124 = arith.mulf %115, %93 : vector<16x128xf32>
    %125 = arith.mulf %109, %117 : vector<16x128xf32>
    %126 = arith.addf %124, %125 : vector<16x128xf32>
    %127 = math.tanh %126 : vector<16x128xf32>
    %128 = arith.mulf %123, %127 : vector<16x128xf32>
    %c3_i32_39 = arith.constant 3 : i32
    %129 = arith.muli %arg1, %c3_i32_39 : i32
    %130 = arith.addi %129, %c2_i32 : i32
    %c8_i32_40 = arith.constant 8 : i32
    %131 = arith.cmpi slt, %130, %c8_i32_40 : i32
    %132 = arith.select %131, %128, %92 : vector<16x128xf32>
    %133 = arith.select %131, %126, %93 : vector<16x128xf32>
    %c3_i32_41 = arith.constant 3 : i32
    %c0_42 = arith.constant 0 : index
    %c0_43 = arith.constant 0 : index
    %134 = vector.load %arg10[%c0_42, %c0_43] : memref<16x128xf32, #tpu.memory_space<vmem>>, vector<16x128xf32>
    tpu.vector_store %arg10[%c0_42, %c0_43], %132 {strides = array<i32>} : memref<16x128xf32, #tpu.memory_space<vmem>>, vector<16x128xf32>,
    %c0_44 = arith.constant 0 : index
    %c0_45 = arith.constant 0 : index
    %135 = vector.load %arg11[%c0_44, %c0_45] : memref<16x128xf32, #tpu.memory_space<vmem>>, vector<16x128xf32>
    tpu.vector_store %arg11[%c0_44, %c0_45], %133 {strides = array<i32>} : memref<16x128xf32, #tpu.memory_space<vmem>>, vector<16x128xf32>,
    %c2_i32_46 = arith.constant 2 : i32
    %136 = arith.cmpi eq, %arg1, %c2_i32_46 : i32
    %137 = arith.extui %136 : i1 to i32
    %c0_i32_47 = arith.constant 0 : i32
    %138 = arith.cmpi ne, %137, %c0_i32_47 : i32
    scf.if %138 {
      %139 = arith.truncf %132 : vector<16x128xf32> to vector<16x128xbf16>
      %c0_48 = arith.constant 0 : index
      %c0_49 = arith.constant 0 : index
      %140 = vector.load %arg6[%c0_48, %c0_49] : memref<128x128xbf16, #tpu.memory_space<vmem>>, vector<128x128xbf16>
      %cst_50 = arith.constant dense<0.000000e+00> : vector<16x128xf32>
      %141 = tpu.matmul %139, %140, %cst_50 {dimension_numbers = #tpu.dot_dimension_numbers<[1], [0], [0], [1], [0, 0, 1, 1], [], []>} : vector<16x128xbf16>, vector<128x128xbf16>, vector<16x128xf32> -> vector<16x128xf32>
      %c0_51 = arith.constant 0 : index
      %c0_52 = arith.constant 0 : index
      %142 = vector.load %arg7[%c0_51, %c0_52] : memref<1x128xf32, #tpu.memory_space<vmem>>, vector<1x128xf32>
      %143 = vector.broadcast %142 : vector<1x128xf32> to vector<16x128xf32>
      %144 = arith.addf %141, %143 : vector<16x128xf32>
      %cst_53 = arith.constant dense<0xFF800000> : vector<16xf32>
      %145 = vector.multi_reduction <maximumf>, %144, %cst_53 [1] : vector<16x128xf32> to vector<16xf32>
      %146 = vector.shape_cast %145 : vector<16xf32> to vector<16x1xf32>
      %147 = vector.broadcast %146 : vector<16x1xf32> to vector<16x128xf32>
      %148 = arith.subf %144, %147 : vector<16x128xf32>
      %149 = math.exp %148 : vector<16x128xf32>
      %cst_54 = arith.constant dense<0.000000e+00> : vector<16xf32>
      %150 = vector.multi_reduction <add>, %149, %cst_54 [1] : vector<16x128xf32> to vector<16xf32>
      %151 = vector.shape_cast %150 : vector<16xf32> to vector<16x1xf32>
      %152 = math.log %151 : vector<16x1xf32>
      %153 = vector.broadcast %152 : vector<16x1xf32> to vector<16x128xf32>
      %154 = arith.subf %148, %153 : vector<16x128xf32>
      %c0_55 = arith.constant 0 : index
      %c0_56 = arith.constant 0 : index
      %155 = vector.load %arg8[%c0_55, %c0_56] : memref<16x128xf32, #tpu.memory_space<vmem>>, vector<16x128xf32>
      tpu.vector_store %arg8[%c0_55, %c0_56], %154 {strides = array<i32>} : memref<16x128xf32, #tpu.memory_space<vmem>>, vector<16x128xf32>,
    } else {
    }
    return
  }
  func.func @transform_0(%arg0: i32, %arg1: i32) -> (i32, i32, i32) {
    %c0_i32 = arith.constant 0 : i32
    %c0_i32_0 = arith.constant 0 : i32
    return %arg1, %arg0, %c0_i32 : i32, i32, i32
  }
  func.func @transform_1(%arg0: i32, %arg1: i32) -> (i32, i32) {
    %c0_i32 = arith.constant 0 : i32
    %c0_i32_0 = arith.constant 0 : i32
    %c0_i32_1 = arith.constant 0 : i32
    return %c0_i32, %c0_i32_0 : i32, i32
  }
  func.func @transform_2(%arg0: i32, %arg1: i32) -> (i32, i32) {
    %c0_i32 = arith.constant 0 : i32
    %c0_i32_0 = arith.constant 0 : i32
    %c0_i32_1 = arith.constant 0 : i32
    return %c0_i32, %c0_i32_0 : i32, i32
  }
  func.func @transform_3(%arg0: i32, %arg1: i32) -> (i32, i32) {
    %c0_i32 = arith.constant 0 : i32
    %c0_i32_0 = arith.constant 0 : i32
    %c0_i32_1 = arith.constant 0 : i32
    return %c0_i32, %c0_i32_0 : i32, i32
  }
  func.func @transform_4(%arg0: i32, %arg1: i32) -> (i32, i32) {
    %c0_i32 = arith.constant 0 : i32
    %c0_i32_0 = arith.constant 0 : i32
    %c0_i32_1 = arith.constant 0 : i32
    return %c0_i32, %c0_i32_0 : i32, i32
  }
  func.func @transform_5(%arg0: i32, %arg1: i32) -> (i32, i32) {
    %c0_i32 = arith.constant 0 : i32
    %c0_i32_0 = arith.constant 0 : i32
    %c0_i32_1 = arith.constant 0 : i32
    return %c0_i32, %c0_i32_0 : i32, i32
  }
  func.func @transform_6(%arg0: i32, %arg1: i32) -> (i32, i32) {
    %c0_i32 = arith.constant 0 : i32
    %c0_i32_0 = arith.constant 0 : i32
    return %arg0, %c0_i32 : i32, i32
  }
}

</mosaic_0001>

<llo_original>
// kernel: tpu_custom_call.1
$region0: #{tpu_custom_call.1}
  #allocation0 [shape = 'u32[]', space=smem, size = 0x4, offset = 0x4, fixed_abs, tag = 'smem constant byte address 0x4 - core index']
  #allocation1 [shape = 'u32[144,128]{1,0:T(1,128)}', space=vmem, size = 0x12000, scoped, tag = 'internal scratch']
  #allocation2 [shape = 'bf16[48,512]{1,0:T(16,128)(2,1)}', space=vmem, size = 0xc000, scoped, tag = 'scratch operand']
  #allocation3 [shape = 'f32[16,128]{1,0:T(8,128)}', space=vmem, size = 0x2000, scoped, tag = 'scratch operand']
  #allocation4 [shape = 'f32[16,128]{1,0:T(8,128)}', space=vmem, size = 0x2000, scoped, tag = 'scratch operand']
  %s0 = inlined_call_operand.hbm [shape: bf16[9,16,128], index: 0, kind: input, shape index: {}]
  %s1 = inlined_call_operand.hbm [shape: bf16[128,512], index: 1, kind: input, shape index: {}]
  %s2 = inlined_call_operand.hbm [shape: bf16[128,512], index: 2, kind: input, shape index: {}]
  %s3 = inlined_call_operand.vmem [shape: f32[1,512], index: 3, kind: input, shape index: {}]
  %s4 = inlined_call_operand.hbm [shape: bf16[128,128], index: 4, kind: input, shape index: {}]
  %s5 = inlined_call_operand.vmem [shape: f32[1,128], index: 5, kind: input, shape index: {}]
  %s6 = inlined_call_operand.hbm [shape: f32[16,128], index: 6, kind: output, shape index: {}]
  %s7 = sld [smem:[#allocation0]]
  $region81: #{tpu_custom_call.1} parent=0
    _
  %s9 = ssub.s32 1, %s7
  %s10 = scalar_select 0, %s9, %s7
  $region1: #{tpu_custom_call.1} parent=0
    #allocation5 [shape = 'u8[24576]{0}', space=vmem, size = 0x6000, scoped, tag = 'input window, operand 0']
    #allocation6 [shape = 's32[2]{0}', space=sflag, size = 0x8, scoped, tag = 'scoped memory for tpu_custom_call.1']
    #allocation7 [shape = 's32[2]{0}', space=sflag, size = 0x8, scoped, tag = 'scoped memory for tpu_custom_call.1']
    #allocation8 [shape = 'u8[131072]{0}', space=vmem, size = 0x20000, scoped, tag = 'input window, operand 1, single buffered']
    #allocation9 [shape = 's32[1]{0}', space=sflag, size = 0x4, scoped, tag = 'scoped memory for tpu_custom_call.1']
    #allocation10 [shape = 'u8[131072]{0}', space=vmem, size = 0x20000, scoped, tag = 'input window, operand 2, single buffered']
    #allocation11 [shape = 'u8[32768]{0}', space=vmem, size = 0x8000, scoped, tag = 'input window, operand 4, single buffered']
    #allocation12 [shape = 's32[1]{0}', space=sflag, size = 0x4, scoped, tag = 'scoped memory for tpu_custom_call.1']
    #allocation13 [shape = 'u8[8192]{0}', space=vmem, size = 0x2000, scoped, tag = 'output window, operand 0, single buffered']
    %11 = vsyncpa [#allocation6], 0
    %s12 = scalar_lea.sflag [#allocation6], 1
    %13 = vsyncpa %s12, 0
    %14 = vsyncpa [#allocation9], 0
    %15 = vsyncpa [#allocation12], 0
    %16 = vsyncpa [#allocation7], 0
    loop: start=0, step=1, limit=5
    $region2: #{tpu_custom_call.1} parent=1 // loop_pre_header
      _
    $region3: #{tpu_custom_call.1} parent=1 // loop_header
      %s18 = sphi 0, %s22
      %p19 = scmp.ge.s32.totalorder %s18, 5
      %s25 = sphi 0, %s37
      %s26 = sphi 0, %s33
      %s27 = sphi 0, %s25
      %s28 = sphi 0, %s26
      %s29 = sphi 0, %s27
      %s30 = sphi 0, %s28
      %s42 = sphi 0, %s44
      %s45 = sphi 0, %s42
      %s46 = sphi 0, %s45
      %s62 = sphi 0, %s46
      %s66 = sphi 0, %s66
      %s68 = sphi 0, %s66
      %s69 = sphi 0, %s68
      %s83 = sphi 0, %s69
      %s87 = sphi 0, %s87
      %s89 = sphi 0, %s87
      %s90 = sphi 0, %s89
      %s104 = sphi 0, %s90
      %s108 = sphi 0, %s108
      %s110 = sphi 0, %s108
      %s111 = sphi 0, %s110
      %s125 = sphi 0, %s111
      %s129 = sphi 0, %s129
      %s131 = sphi 0, %s129
      %s132 = sphi 0, %s131
      %s146 = sphi 0, %s132
      %s150 = sphi 0, %s150
      %s152 = sphi 0, %s150
      %s153 = sphi 0, %s152
      %s167 = sphi 0, %s153
      %s173 = sphi 0, %s175
      %s176 = sphi 0, %s173
      %s177 = sphi 0, %s176
      %s193 = sphi 0, %s177
    $region4: #{tpu_custom_call.1} parent=1 // loop_header_branch
      %21 = sbr.rel (%p19) target = $region8
    $region5: #{tpu_custom_call.1} parent=1 // loop_body
      %s23 = ssub.s32 %s18, 1
      %s24 = ssub.s32 %s18, 2
      %s31 = sadd.s32 1, %s26
      %p32 = scmp.ge.s32.totalorder %s31, 3
      %s33 = scalar_select %p32, 0, %s31
      %s34 = sadd.s32 1, %s25
      %s35 = scalar_select %p32, %s34, %s25
      %p36 = scmp.ge.s32.totalorder %s35, 1
      %s37 = scalar_select %p36, 0, %s35
      %s38 = ssub.s32 %s26, %s33
      %s39 = ssub.s32 %s25, %s37
      %s40 = sor.u32 %s38, %s39
      %p41 = scmp.eq.s32.totalorder %s40, 0
      %s43 = sadd.s32 %s42, 1
      %s44 = scalar_select %p41, %s42, %s43
      %p47 = pneg %p41
      %p48 = scmp.eq.s32.totalorder %s18, 2
      %p49 = por %p47, %p48
      %p50 = scmp.ne.s32.totalorder %s42, %s45
      %p51 = scmp.eq.s32.totalorder %s18, 0
      %p52 = por %p50, %p51
      %p53 = scmp.ne.s32.totalorder %s42, %s45
      %p54 = scmp.eq.s32.totalorder %s23, 2
      %p55 = por %p53, %p54
      %p56 = scmp.ne.s32.totalorder %s45, %s46
      %p57 = scmp.eq.s32.totalorder %s23, 0
      %p58 = por %p56, %p57
      %p59 = scmp.ne.s32.totalorder %s45, %s46
      %p60 = scmp.eq.s32.totalorder %s24, 2
      %p61 = por %p59, %p60
      %p63 = scmp.ne.s32.totalorder %s46, %s62
      %p64 = scmp.eq.s32.totalorder %s24, 0
      %p65 = por %p63, %p64
      %s67 = sadd.s32 %s66, 1
      %p70 = scmp.eq.s32.totalorder %s18, 2
      %p71 = scmp.ne.s32.totalorder %s66, %s68
      %p72 = scmp.eq.s32.totalorder %s18, 0
      %p73 = por %p71, %p72
      %p74 = scmp.ne.s32.totalorder %s66, %s68
      %p75 = scmp.eq.s32.totalorder %s23, 2
      %p76 = por %p74, %p75
      %p77 = scmp.ne.s32.totalorder %s68, %s69
      %p78 = scmp.eq.s32.totalorder %s23, 0
      %p79 = por %p77, %p78
      %p80 = scmp.ne.s32.totalorder %s68, %s69
      %p81 = scmp.eq.s32.totalorder %s24, 2
      %p82 = por %p80, %p81
      %p84 = scmp.ne.s32.totalorder %s69, %s83
      %p85 = scmp.eq.s32.totalorder %s24, 0
      %p86 = por %p84, %p85
      %s88 = sadd.s32 %s87, 1
      %p91 = scmp.eq.s32.totalorder %s18, 2
      %p92 = scmp.ne.s32.totalorder %s87, %s89
      %p93 = scmp.eq.s32.totalorder %s18, 0
      %p94 = por %p92, %p93
      %p95 = scmp.ne.s32.totalorder %s87, %s89
      %p96 = scmp.eq.s32.totalorder %s23, 2
      %p97 = por %p95, %p96
      %p98 = scmp.ne.s32.totalorder %s89, %s90
      %p99 = scmp.eq.s32.totalorder %s23, 0
      %p100 = por %p98, %p99
      %p101 = scmp.ne.s32.totalorder %s89, %s90
      %p102 = scmp.eq.s32.totalorder %s24, 2
      %p103 = por %p101, %p102
      %p105 = scmp.ne.s32.totalorder %s90, %s104
      %p106 = scmp.eq.s32.totalorder %s24, 0
      %p107 = por %p105, %p106
      %s109 = sadd.s32 %s108, 1
      %p112 = scmp.eq.s32.totalorder %s18, 2
      %p113 = scmp.ne.s32.totalorder %s108, %s110
      %p114 = scmp.eq.s32.totalorder %s18, 0
      %p115 = por %p113, %p114
      %p116 = scmp.ne.s32.totalorder %s108, %s110
      %p117 = scmp.eq.s32.totalorder %s23, 2
      %p118 = por %p116, %p117
      %p119 = scmp.ne.s32.totalorder %s110, %s111
      %p120 = scmp.eq.s32.totalorder %s23, 0
      %p121 = por %p119, %p120
      %p122 = scmp.ne.s32.totalorder %s110, %s111
      %p123 = scmp.eq.s32.totalorder %s24, 2
      %p124 = por %p122, %p123
      %p126 = scmp.ne.s32.totalorder %s111, %s125
      %p127 = scmp.eq.s32.totalorder %s24, 0
      %p128 = por %p126, %p127
      %s130 = sadd.s32 %s129, 1
      %p133 = scmp.eq.s32.totalorder %s18, 2
      %p134 = scmp.ne.s32.totalorder %s129, %s131
      %p135 = scmp.eq.s32.totalorder %s18, 0
      %p136 = por %p134, %p135
      %p137 = scmp.ne.s32.totalorder %s129, %s131
      %p138 = scmp.eq.s32.totalorder %s23, 2
      %p139 = por %p137, %p138
      %p140 = scmp.ne.s32.totalorder %s131, %s132
      %p141 = scmp.eq.s32.totalorder %s23, 0
      %p142 = por %p140, %p141
      %p143 = scmp.ne.s32.totalorder %s131, %s132
      %p144 = scmp.eq.s32.totalorder %s24, 2
      %p145 = por %p143, %p144
      %p147 = scmp.ne.s32.totalorder %s132, %s146
      %p148 = scmp.eq.s32.totalorder %s24, 0
      %p149 = por %p147, %p148
      %s151 = sadd.s32 %s150, 1
      %p154 = scmp.eq.s32.totalorder %s18, 2
      %p155 = scmp.ne.s32.totalorder %s150, %s152
      %p156 = scmp.eq.s32.totalorder %s18, 0
      %p157 = por %p155, %p156
      %p158 = scmp.ne.s32.totalorder %s150, %s152
      %p159 = scmp.eq.s32.totalorder %s23, 2
      %p160 = por %p158, %p159
      %p161 = scmp.ne.s32.totalorder %s152, %s153
      %p162 = scmp.eq.s32.totalorder %s23, 0
      %p163 = por %p161, %p162
      %p164 = scmp.ne.s32.totalorder %s152, %s153
      %p165 = scmp.eq.s32.totalorder %s24, 2
      %p166 = por %p164, %p165
      %p168 = scmp.ne.s32.totalorder %s153, %s167
      %p169 = scmp.eq.s32.totalorder %s24, 0
      %p170 = por %p168, %p169
      %s171 = ssub.s32 %s25, %s37
      %p172 = scmp.eq.s32.totalorder %s171, 0
      %s174 = sadd.s32 %s173, 1
      %s175 = scalar_select %p172, %s173, %s174
      %p178 = pneg %p172
      %p179 = scmp.eq.s32.totalorder %s18, 2
      %p180 = por %p178, %p179
      %p181 = scmp.ne.s32.totalorder %s173, %s176
      %p182 = scmp.eq.s32.totalorder %s18, 0
      %p183 = por %p181, %p182
      %p184 = scmp.ne.s32.totalorder %s173, %s176
      %p185 = scmp.eq.s32.totalorder %s23, 2
      %p186 = por %p184, %p185
      %p187 = scmp.ne.s32.totalorder %s176, %s177
      %p188 = scmp.eq.s32.totalorder %s23, 0
      %p189 = por %p187, %p188
      %p190 = scmp.ne.s32.totalorder %s176, %s177
      %p191 = scmp.eq.s32.totalorder %s24, 2
      %p192 = por %p190, %p191
      %p194 = scmp.ne.s32.totalorder %s177, %s193
      %p195 = scmp.eq.s32.totalorder %s24, 0
      %p196 = por %p194, %p195
      %p197 = scmp.le.s32.totalorder 1, %s18
      %p198 = scmp.lt.s32.totalorder %s18, 4
      %p199 = pnand %p197, %p198
      %p200 = pneg %p199
      // Predicated region
      $region9: #{tpu_custom_call.1} parent=5 // pred_check
        _
      $region10: #{tpu_custom_call.1} parent=5 // pred_check_branch
        %202 = sbr.rel (%p199) target = $region12
      $region11: #{tpu_custom_call.1} parent=5 // pred_region
        %s203 = ssub.s32 %s18, 1
        // Predicated region
        $region13: #{tpu_custom_call.1} parent=11 // pred_check
          %p204 = pneg %p79
        $region14: #{tpu_custom_call.1} parent=11 // pred_check_branch
          %206 = sbr.rel (%p204) target = $region16
        $region15: #{tpu_custom_call.1} parent=11 // pred_region
          %s208 = ssub.s32 4096, 4096
          %209 = vsyncadd [#allocation9], %s208
          %s210 = sshll.u32 [#allocation8], 4
          %s211 = int_to_ptr.vmem [resolvable:$true] %s210
          %216 = dma.hbm_to_vmem [thread:$0]  %s1, 4096, %s211, [#allocation9], 256, 256, 16
        $region16: #{tpu_custom_call.1} parent=11 // pred_fallthru
          _
        // Predicated region
        $region17: #{tpu_custom_call.1} parent=11 // pred_check
          %p217 = pneg %p100
        $region18: #{tpu_custom_call.1} parent=11 // pred_check_branch
          %219 = sbr.rel (%p217) target = $region20
        $region19: #{tpu_custom_call.1} parent=11 // pred_region
          %s221 = ssub.s32 4096, 4096
          %222 = vsyncadd [#allocation9], %s221
          %s223 = sshll.u32 [#allocation10], 4
          %s224 = int_to_ptr.vmem [resolvable:$true] %s223
          %229 = dma.hbm_to_vmem [thread:$0]  %s2, 4096, %s224, [#allocation9], 256, 256, 16
        $region20: #{tpu_custom_call.1} parent=11 // pred_fallthru
          _
        // Predicated region
        $region21: #{tpu_custom_call.1} parent=11 // pred_check
          %p230 = pneg %p121
        $region22: #{tpu_custom_call.1} parent=11 // pred_check_branch
          %232 = sbr.rel (%p230) target = $region24
        $region23: #{tpu_custom_call.1} parent=11 // pred_region
          _
        $region24: #{tpu_custom_call.1} parent=11 // pred_fallthru
          _
        // Predicated region
        $region25: #{tpu_custom_call.1} parent=11 // pred_check
          %p233 = pneg %p142
        $region26: #{tpu_custom_call.1} parent=11 // pred_check_branch
          %235 = sbr.rel (%p233) target = $region28
        $region27: #{tpu_custom_call.1} parent=11 // pred_region
          %s237 = ssub.s32 1024, 1024
          %238 = vsyncadd [#allocation12], %s237
          %s239 = sshll.u32 [#allocation11], 4
          %s240 = int_to_ptr.vmem [resolvable:$true] %s239
          %245 = dma.hbm_to_vmem [thread:$0]  %s4, 1024, %s240, [#allocation12], 64, 64, 4
        $region28: #{tpu_custom_call.1} parent=11 // pred_fallthru
          _
        // Predicated region
        $region29: #{tpu_custom_call.1} parent=11 // pred_check
          %p246 = pneg %p163
        $region30: #{tpu_custom_call.1} parent=11 // pred_check_branch
          %248 = sbr.rel (%p246) target = $region32
        $region31: #{tpu_custom_call.1} parent=11 // pred_region
          _
        $region32: #{tpu_custom_call.1} parent=11 // pred_fallthru
          _
      $region12: #{tpu_custom_call.1} parent=5 // pred_fallthru
        _
      %p249 = scmp.lt.s32.totalorder %s18, 3
      // Predicated region
      $region33: #{tpu_custom_call.1} parent=5 // pred_check
        %p250 = pneg %p249
      $region34: #{tpu_custom_call.1} parent=5 // pred_check_branch
        %252 = sbr.rel (%p250) target = $region36
      $region35: #{tpu_custom_call.1} parent=5 // pred_region
        // Predicated region
        $region37: #{tpu_custom_call.1} parent=35 // pred_check
          %p253 = pneg %p52
        $region38: #{tpu_custom_call.1} parent=35 // pred_check_branch
          %255 = sbr.rel (%p253) target = $region40
        $region39: #{tpu_custom_call.1} parent=35 // pred_region
          %s256 = sand.u32 %s42, 1
          %s257 = scalar_lea.sflag [#allocation6], %s256
          %s258 = sand.u32 %s42, 1
          %s259 = smul.addr %s258, 24
          %s260 = scalar_lea.vmem [#allocation5], %s259
          %s261 = smul.u32 3, %s26
          %s262 = smul.u32 2, %s25
          %s264 = ssub.s32 384, 384
          %265 = vsyncadd %s257, %s264
          %s266 = smul.addr %s261, 2
          %s267 = sadd.s32 %s262, %s266
          %s268 = smul.addr %s267, 64
          %s269 = scalar_lea.hbm %s0, %s268
          %s270 = sshll.u32 %s260, 4
          %s271 = int_to_ptr.vmem [resolvable:$true] %s270
          %276 = dma.hbm_to_vmem [thread:$0]  %s269, 384, %s271, %s257, 64, 64, 4
        $region40: #{tpu_custom_call.1} parent=35 // pred_fallthru
          _
      $region36: #{tpu_custom_call.1} parent=5 // pred_fallthru
        _
      %p277 = scmp.le.s32.totalorder 1, %s18
      %p278 = scmp.lt.s32.totalorder %s18, 4
      %p279 = pnand %p277, %p278
      %p280 = pneg %p279
      // Predicated region
      $region41: #{tpu_custom_call.1} parent=5 // pred_check
        _
      $region42: #{tpu_custom_call.1} parent=5 // pred_check_branch
        %282 = sbr.rel (%p279) target = $region44
      $region43: #{tpu_custom_call.1} parent=5 // pred_region
        %s283 = ssub.s32 %s18, 1
        %s284 = sand.u32 %s45, 1
        %s285 = scalar_lea.sflag [#allocation6], %s284
        %s286 = sand.u32 %s45, 1
        %s287 = smul.addr %s286, 24
        %s288 = scalar_lea.vmem [#allocation5], %s287
        // Predicated region
        $region45: #{tpu_custom_call.1} parent=43 // pred_check
          %p289 = pneg %p58
        $region46: #{tpu_custom_call.1} parent=43 // pred_check_branch
          %291 = sbr.rel (%p289) target = $region48
        $region47: #{tpu_custom_call.1} parent=43 // pred_region
          %292 = dma.done %s285, 384
        $region48: #{tpu_custom_call.1} parent=43 // pred_fallthru
          _
        // Predicated region
        $region49: #{tpu_custom_call.1} parent=43 // pred_check
          %p293 = pneg %p79
        $region50: #{tpu_custom_call.1} parent=43 // pred_check_branch
          %295 = sbr.rel (%p293) target = $region52
        $region51: #{tpu_custom_call.1} parent=43 // pred_region
          %296 = dma.done [#allocation9], 4096
        $region52: #{tpu_custom_call.1} parent=43 // pred_fallthru
          _
        // Predicated region
        $region53: #{tpu_custom_call.1} parent=43 // pred_check
          %p297 = pneg %p100
        $region54: #{tpu_custom_call.1} parent=43 // pred_check_branch
          %299 = sbr.rel (%p297) target = $region56
        $region55: #{tpu_custom_call.1} parent=43 // pred_region
          %300 = dma.done [#allocation9], 4096
        $region56: #{tpu_custom_call.1} parent=43 // pred_fallthru
          _
        // Predicated region
        $region57: #{tpu_custom_call.1} parent=43 // pred_check
          %p301 = pneg %p142
        $region58: #{tpu_custom_call.1} parent=43 // pred_check_branch
          %303 = sbr.rel (%p301) target = $region60
        $region59: #{tpu_custom_call.1} parent=43 // pred_region
          %304 = dma.done [#allocation12], 1024
        $region60: #{tpu_custom_call.1} parent=43 // pred_fallthru
          _
        %s305 = sand.u32 %s45, 1
        %s306 = scalar_lea.sflag [#allocation6], %s305
        %s307 = sand.u32 %s45, 1
        %s308 = smul.addr %s307, 24
        %s309 = scalar_lea.vmem [#allocation5], %s308
        %p310 = pneg %p58
        %p311 = pneg %p55
        %p312 = pneg %p79
        %p313 = pneg %p76
        %p314 = pneg %p100
        %p315 = pneg %p97
        %p316 = pneg %p121
        %p317 = pneg %p118
        %p318 = pneg %p142
        %p319 = pneg %p139
        %p320 = pneg %p163
        %p321 = pneg %p160
        %p322 = pneg %p189
        %p323 = pneg %p186
        %s324 = smul.u32 3, %s28
        %s325 = smul.u32 2, %s27
        %s326 = smul.u32 2, %s27
        %p328 = scmp.eq.s32.totalorder %s28, 0
        // Predicated region
        $region61: #{tpu_custom_call.1} parent=43 // pred_check
          %p329 = pneg %p328
        $region62: #{tpu_custom_call.1} parent=43 // pred_check_branch
          %331 = sbr.rel (%p329) target = $region64
        $region63: #{tpu_custom_call.1} parent=43 // pred_region
          %332 = vst [vmem:[#allocation3] sm:$0xff] 0.0
          %333 = vst [vmem:[#allocation3 + $0x8] sm:$0xff] 0.0
          %334 = vst [vmem:[#allocation4] sm:$0xff] 0.0
          %335 = vst [vmem:[#allocation4 + $0x8] sm:$0xff] 0.0
        $region64: #{tpu_custom_call.1} parent=43 // pred_fallthru
          _
        %v336 = vld [vmem:[%s288] sm:$0xf]
        %v337 = vld [vmem:[%s288 + $0x4] sm:$0xf]
        %v338 = vld [vmem:[%s288 + $0x8] sm:$0xf]
        %v339 = vld [vmem:[%s288 + $0xc] sm:$0xf]
        %v340 = vld [vmem:[%s288 + $0x10] sm:$0xf]
        %v341 = vld [vmem:[%s288 + $0x14] sm:$0xf]
        %v342 = vld [vmem:[#allocation8] sm:$0xff]
        %v343 = vld [vmem:[#allocation8 + $0x8] sm:$0xff]
        %v344 = vld [vmem:[#allocation8 + $0x10] sm:$0xff]
        %v345 = vld [vmem:[#allocation8 + $0x18] sm:$0xff]
        %v346 = vld [vmem:[#allocation8 + $0x20] sm:$0xff]
        %v347 = vld [vmem:[#allocation8 + $0x28] sm:$0xff]
        %v348 = vld [vmem:[#allocation8 + $0x30] sm:$0xff]
        %v349 = vld [vmem:[#allocation8 + $0x38] sm:$0xff]
        %v350 = vld [vmem:[#allocation8 + $0x40] sm:$0xff]
        %v351 = vld [vmem:[#allocation8 + $0x48] sm:$0xff]
        %v352 = vld [vmem:[#allocation8 + $0x50] sm:$0xff]
        %v353 = vld [vmem:[#allocation8 + $0x58] sm:$0xff]
        %v354 = vld [vmem:[#allocation8 + $0x60] sm:$0xff]
        %v355 = vld [vmem:[#allocation8 + $0x68] sm:$0xff]
        %v356 = vld [vmem:[#allocation8 + $0x70] sm:$0xff]
        %v357 = vld [vmem:[#allocation8 + $0x78] sm:$0xff]
        %v358 = vld [vmem:[#allocation8 + $0x80] sm:$0xff]
        %v359 = vld [vmem:[#allocation8 + $0x88] sm:$0xff]
        %v360 = vld [vmem:[#allocation8 + $0x90] sm:$0xff]
        %v361 = vld [vmem:[#allocation8 + $0x98] sm:$0xff]
        %v362 = vld [vmem:[#allocation8 + $0xa0] sm:$0xff]
        %v363 = vld [vmem:[#allocation8 + $0xa8] sm:$0xff]
        %v364 = vld [vmem:[#allocation8 + $0xb0] sm:$0xff]
        %v365 = vld [vmem:[#allocation8 + $0xb8] sm:$0xff]
        %v366 = vld [vmem:[#allocation8 + $0xc0] sm:$0xff]
        %v367 = vld [vmem:[#allocation8 + $0xc8] sm:$0xff]
        %v368 = vld [vmem:[#allocation8 + $0xd0] sm:$0xff]
        %v369 = vld [vmem:[#allocation8 + $0xd8] sm:$0xff]
        %v370 = vld [vmem:[#allocation8 + $0xe0] sm:$0xff]
        %v371 = vld [vmem:[#allocation8 + $0xe8] sm:$0xff]
        %v372 = vld [vmem:[#allocation8 + $0xf0] sm:$0xff]
        %v373 = vld [vmem:[#allocation8 + $0xf8] sm:$0xff]
        %v380 = vunpack.c.l.b16 %v336
        %v381 = vunpack.c.l.b16 %v337
        %v382 = vunpack.c.l.b16 %v338
        %v383 = vunpack.c.l.b16 %v339
        %v384 = vunpack.c.l.b16 %v340
        %v385 = vunpack.c.l.b16 %v341
        %v386 = vpack.c.b16 %v381, %v380
        %v387 = vpack.c.b16 %v383, %v382
        %v388 = vpack.c.b16 %v385, %v384
        %v424 = vunpack.c.l.b16 %v342
        %v425 = vunpack.c.h.b16 %v342
        %v426 = vunpack.c.l.b16 %v343
        %v427 = vunpack.c.h.b16 %v343
        %v428 = vunpack.c.l.b16 %v344
        %v429 = vunpack.c.h.b16 %v344
        %v430 = vunpack.c.l.b16 %v345
        %v431 = vunpack.c.h.b16 %v345
        %v432 = vunpack.c.l.b16 %v346
        %v433 = vunpack.c.h.b16 %v346
        %v434 = vunpack.c.l.b16 %v347
        %v435 = vunpack.c.h.b16 %v347
        %v436 = vunpack.c.l.b16 %v348
        %v437 = vunpack.c.h.b16 %v348
        %v438 = vunpack.c.l.b16 %v349
        %v439 = vunpack.c.h.b16 %v349
        %v440 = vunpack.c.l.b16 %v350
        %v441 = vunpack.c.h.b16 %v350
        %v442 = vunpack.c.l.b16 %v351
        %v443 = vunpack.c.h.b16 %v351
        %v444 = vunpack.c.l.b16 %v352
        %v445 = vunpack.c.h.b16 %v352
        %v446 = vunpack.c.l.b16 %v353
        %v447 = vunpack.c.h.b16 %v353
        %v448 = vunpack.c.l.b16 %v354
        %v449 = vunpack.c.h.b16 %v354
        %v450 = vunpack.c.l.b16 %v355
        %v451 = vunpack.c.h.b16 %v355
        %v452 = vunpack.c.l.b16 %v356
        %v453 = vunpack.c.h.b16 %v356
        %v454 = vunpack.c.l.b16 %v357
        %v455 = vunpack.c.h.b16 %v357
        %v456 = vunpack.c.l.b16 %v358
        %v457 = vunpack.c.h.b16 %v358
        %v458 = vunpack.c.l.b16 %v359
        %v459 = vunpack.c.h.b16 %v359
        %v460 = vunpack.c.l.b16 %v360
        %v461 = vunpack.c.h.b16 %v360
        %v462 = vunpack.c.l.b16 %v361
        %v463 = vunpack.c.h.b16 %v361
        %v464 = vunpack.c.l.b16 %v362
        %v465 = vunpack.c.h.b16 %v362
        %v466 = vunpack.c.l.b16 %v363
        %v467 = vunpack.c.h.b16 %v363
        %v468 = vunpack.c.l.b16 %v364
        %v469 = vunpack.c.h.b16 %v364
        %v470 = vunpack.c.l.b16 %v365
        %v471 = vunpack.c.h.b16 %v365
        %v472 = vunpack.c.l.b16 %v366
        %v473 = vunpack.c.h.b16 %v366
        %v474 = vunpack.c.l.b16 %v367
        %v475 = vunpack.c.h.b16 %v367
        %v476 = vunpack.c.l.b16 %v368
        %v477 = vunpack.c.h.b16 %v368
        %v478 = vunpack.c.l.b16 %v369
        %v479 = vunpack.c.h.b16 %v369
        %v480 = vunpack.c.l.b16 %v370
        %v481 = vunpack.c.h.b16 %v370
        %v482 = vunpack.c.l.b16 %v371
        %v483 = vunpack.c.h.b16 %v371
        %v484 = vunpack.c.l.b16 %v372
        %v485 = vunpack.c.h.b16 %v372
        %v486 = vunpack.c.l.b16 %v373
        %v487 = vunpack.c.h.b16 %v373
        %v488 = vpack.c.b16 %v428, %v424
        %v489 = vpack.c.b16 %v429, %v425
        %v490 = vpack.c.b16 %v430, %v426
        %v491 = vpack.c.b16 %v431, %v427
        %v492 = vpack.c.b16 %v436, %v432
        %v493 = vpack.c.b16 %v437, %v433
        %v494 = vpack.c.b16 %v438, %v434
        %v495 = vpack.c.b16 %v439, %v435
        %v496 = vpack.c.b16 %v444, %v440
        %v497 = vpack.c.b16 %v445, %v441
        %v498 = vpack.c.b16 %v446, %v442
        %v499 = vpack.c.b16 %v447, %v443
        %v500 = vpack.c.b16 %v452, %v448
        %v501 = vpack.c.b16 %v453, %v449
        %v502 = vpack.c.b16 %v454, %v450
        %v503 = vpack.c.b16 %v455, %v451
        %v504 = vpack.c.b16 %v460, %v456
        %v505 = vpack.c.b16 %v461, %v457
        %v506 = vpack.c.b16 %v462, %v458
        %v507 = vpack.c.b16 %v463, %v459
        %v508 = vpack.c.b16 %v468, %v464
        %v509 = vpack.c.b16 %v469, %v465
        %v510 = vpack.c.b16 %v470, %v466
        %v511 = vpack.c.b16 %v471, %v467
        %v512 = vpack.c.b16 %v476, %v472
        %v513 = vpack.c.b16 %v477, %v473
        %v514 = vpack.c.b16 %v478, %v474
        %v515 = vpack.c.b16 %v479, %v475
        %v516 = vpack.c.b16 %v484, %v480
        %v517 = vpack.c.b16 %v485, %v481
        %v518 = vpack.c.b16 %v486, %v482
        %v519 = vpack.c.b16 %v487, %v483
        %552 = vmatprep.subr.bf16.mxu0 %v489
        %553 = vmatpush1.bf16.msra.mxu0 %v488
        %554 = vmatprep.subr.bf16.mxu0 %v493
        %555 = vmatpush1.bf16.msra.mxu0 %v492
        %556 = vmatprep.subr.bf16.mxu0 %v497
        %557 = vmatpush1.bf16.msra.mxu0 %v496
        %558 = vmatprep.subr.bf16.mxu0 %v501
        %559 = vmatpush1.bf16.msra.mxu0 %v500
        %560 = vmatprep.subr.bf16.mxu0 %v505
        %561 = vmatpush1.bf16.msra.mxu0 %v504
        %562 = vmatprep.subr.bf16.mxu0 %v509
        %563 = vmatpush1.bf16.msra.mxu0 %v508
        %564 = vmatprep.subr.bf16.mxu0 %v513
        %565 = vmatpush1.bf16.msra.mxu0 %v512
        %566 = vmatprep.subr.bf16.mxu0 %v517
        %567 = vmatpush1.bf16.msra.mxu0 %v516
        %568 = vmatprep.subr.bf16.mxu0 0
        %569 = vmatpush1.bf16.msra.mxu0 0
        %570 = vmatprep.subr.bf16.mxu0 0
        %571 = vmatpush1.bf16.msra.mxu0 0
        %572 = vmatprep.subr.bf16.mxu0 0
        %573 = vmatpush1.bf16.msra.mxu0 0
        %574 = vmatprep.subr.bf16.mxu0 0
        %575 = vmatpush1.bf16.msra.mxu0 0
        %576 = vmatprep.subr.bf16.mxu0 0
        %577 = vmatpush1.bf16.msra.mxu0 0
        %578 = vmatprep.subr.bf16.mxu0 0
        %579 = vmatpush1.bf16.msra.mxu0 0
        %580 = vmatprep.subr.bf16.mxu0 0
        %581 = vmatpush1.bf16.msra.mxu0 0
        %582 = vmatprep.subr.bf16.mxu0 0
        %583 = vmatpush1.bf16.msra.mxu0 0
        %584 = vmatprep.mubr.bf16.mxu0 0
        %585 = vmatmul.mubr.bf16.gmra.mrb[0].mxu0 %v386
        %v586 = vpop.f32.mrb[0].mxu0
        %v587 = vadd.f32 0.0, %v586
        %v588 = vpop.f32.mrb[0].mxu0
        %v589 = vadd.f32 0.0, %v588
        %v590 = vpop.f32.mrb[0].mxu0
        %v591 = vadd.f32 0.0, %v590
        %v592 = vpop.f32.mrb[0].mxu0
        %v593 = vadd.f32 0.0, %v592
        %594 = vmatprep.mubr.bf16.mxu0 0
        %595 = vmatmul.mubr.bf16.gmra.mrb[0].mxu0 %v387
        %v596 = vpop.f32.mrb[0].mxu0
        %v597 = vadd.f32 0.0, %v596
        %v598 = vpop.f32.mrb[0].mxu0
        %v599 = vadd.f32 0.0, %v598
        %v600 = vpop.f32.mrb[0].mxu0
        %v601 = vadd.f32 0.0, %v600
        %v602 = vpop.f32.mrb[0].mxu0
        %v603 = vadd.f32 0.0, %v602
        %604 = vmatprep.mubr.bf16.mxu0 0
        %605 = vmatmul.mubr.bf16.gmra.mrb[0].mxu0 %v388
        %v606 = vpop.f32.mrb[0].mxu0
        %v607 = vadd.f32 0.0, %v606
        %v608 = vpop.f32.mrb[0].mxu0
        %v609 = vadd.f32 0.0, %v608
        %v610 = vpop.f32.mrb[0].mxu0
        %v611 = vadd.f32 0.0, %v610
        %v612 = vpop.f32.mrb[0].mxu0
        %v613 = vadd.f32 0.0, %v612
        %614 = vdwg.mxu0
        %615 = vmatprep.subr.bf16.mxu0 %v491
        %616 = vmatpush1.bf16.msra.mxu0 %v490
        %617 = vmatprep.subr.bf16.mxu0 %v495
        %618 = vmatpush1.bf16.msra.mxu0 %v494
        %619 = vmatprep.subr.bf16.mxu0 %v499
        %620 = vmatpush1.bf16.msra.mxu0 %v498
        %621 = vmatprep.subr.bf16.mxu0 %v503
        %622 = vmatpush1.bf16.msra.mxu0 %v502
        %623 = vmatprep.subr.bf16.mxu0 %v507
        %624 = vmatpush1.bf16.msra.mxu0 %v506
        %625 = vmatprep.subr.bf16.mxu0 %v511
        %626 = vmatpush1.bf16.msra.mxu0 %v510
        %627 = vmatprep.subr.bf16.mxu0 %v515
        %628 = vmatpush1.bf16.msra.mxu0 %v514
        %629 = vmatprep.subr.bf16.mxu0 %v519
        %630 = vmatpush1.bf16.msra.mxu0 %v518
        %631 = vmatprep.subr.bf16.mxu0 0
        %632 = vmatpush1.bf16.msra.mxu0 0
        %633 = vmatprep.subr.bf16.mxu0 0
        %634 = vmatpush1.bf16.msra.mxu0 0
        %635 = vmatprep.subr.bf16.mxu0 0
        %636 = vmatpush1.bf16.msra.mxu0 0
        %637 = vmatprep.subr.bf16.mxu0 0
        %638 = vmatpush1.bf16.msra.mxu0 0
        %639 = vmatprep.subr.bf16.mxu0 0
        %640 = vmatpush1.bf16.msra.mxu0 0
        %641 = vmatprep.subr.bf16.mxu0 0
        %642 = vmatpush1.bf16.msra.mxu0 0
        %643 = vmatprep.subr.bf16.mxu0 0
        %644 = vmatpush1.bf16.msra.mxu0 0
        %645 = vmatprep.subr.bf16.mxu0 0
        %646 = vmatpush1.bf16.msra.mxu0 0
        %647 = vmatprep.mubr.bf16.mxu0 0
        %648 = vmatmul.mubr.bf16.gmra.mrb[0].mxu0 %v386
        %v649 = vpop.f32.mrb[0].mxu0
        %v650 = vadd.f32 0.0, %v649
        %v651 = vpop.f32.mrb[0].mxu0
        %v652 = vadd.f32 0.0, %v651
        %v653 = vpop.f32.mrb[0].mxu0
        %v654 = vadd.f32 0.0, %v653
        %v655 = vpop.f32.mrb[0].mxu0
        %v656 = vadd.f32 0.0, %v655
        %657 = vmatprep.mubr.bf16.mxu0 0
        %658 = vmatmul.mubr.bf16.gmra.mrb[0].mxu0 %v387
        %v659 = vpop.f32.mrb[0].mxu0
        %v660 = vadd.f32 0.0, %v659
        %v661 = vpop.f32.mrb[0].mxu0
        %v662 = vadd.f32 0.0, %v661
        %v663 = vpop.f32.mrb[0].mxu0
        %v664 = vadd.f32 0.0, %v663
        %v665 = vpop.f32.mrb[0].mxu0
        %v666 = vadd.f32 0.0, %v665
        %667 = vmatprep.mubr.bf16.mxu0 0
        %668 = vmatmul.mubr.bf16.gmra.mrb[0].mxu0 %v388
        %v669 = vpop.f32.mrb[0].mxu0
        %v670 = vadd.f32 0.0, %v669
        %v671 = vpop.f32.mrb[0].mxu0
        %v672 = vadd.f32 0.0, %v671
        %v673 = vpop.f32.mrb[0].mxu0
        %v674 = vadd.f32 0.0, %v673
        %v675 = vpop.f32.mrb[0].mxu0
        %v676 = vadd.f32 0.0, %v675
        %677 = vdwg.mxu0
        %v678 = vpack.c.bf16 %v591, %v587
        %v679 = vpack.c.bf16 %v593, %v589
        %v680 = vpack.c.bf16 %v654, %v650
        %v681 = vpack.c.bf16 %v656, %v652
        %v682 = vpack.c.bf16 %v601, %v597
        %v683 = vpack.c.bf16 %v603, %v599
        %v684 = vpack.c.bf16 %v664, %v660
        %v685 = vpack.c.bf16 %v666, %v662
        %v686 = vpack.c.bf16 %v611, %v607
        %v687 = vpack.c.bf16 %v613, %v609
        %v688 = vpack.c.bf16 %v674, %v670
        %v689 = vpack.c.bf16 %v676, %v672
        %690 = vst [vmem:[#allocation2] sm:$0xff] %v678
        %691 = vst [vmem:[#allocation2 + $0x8] sm:$0xff] %v679
        %692 = vst [vmem:[#allocation2 + $0x10] sm:$0xff] %v680
        %693 = vst [vmem:[#allocation2 + $0x18] sm:$0xff] %v681
        %694 = vst [vmem:[#allocation2 + $0x20] sm:$0xff] %v682
        %695 = vst [vmem:[#allocation2 + $0x28] sm:$0xff] %v683
        %696 = vst [vmem:[#allocation2 + $0x30] sm:$0xff] %v684
        %697 = vst [vmem:[#allocation2 + $0x38] sm:$0xff] %v685
        %698 = vst [vmem:[#allocation2 + $0x40] sm:$0xff] %v686
        %699 = vst [vmem:[#allocation2 + $0x48] sm:$0xff] %v687
        %700 = vst [vmem:[#allocation2 + $0x50] sm:$0xff] %v688
        %701 = vst [vmem:[#allocation2 + $0x58] sm:$0xff] %v689
        %v702 = vld [vmem:[%s3] sm:$0xf]
        %v704 = vlaneseq
        %v705 = vshrl.u32 %v704, 7
        %v706 = vsub.s32 0, %v705
        %v707 = vrot.slane %v702, %v706
        %v708 = vlaneseq
        %v709 = vshrl.u32 %v708, 7
        %v710 = vsub.s32 1, %v709
        %v711 = vrot.slane %v702, %v710
        %v712 = vlaneseq
        %v713 = vshrl.u32 %v712, 7
        %v714 = vsub.s32 2, %v713
        %v715 = vrot.slane %v702, %v714
        %v716 = vlaneseq
        %v717 = vshrl.u32 %v716, 7
        %v718 = vsub.s32 3, %v717
        %v719 = vrot.slane %v702, %v718
        %v724 = vld [vmem:[#allocation3] sm:$0xff]
        %v725 = vld [vmem:[#allocation3 + $0x8] sm:$0xff]
        %v726 = vld [vmem:[#allocation4] sm:$0xff]
        %v727 = vld [vmem:[#allocation4 + $0x8] sm:$0xff]
        %s728 = smul.u32 0, 4
        %s729 = smul.addr %s728, 8
        %s730 = scalar_lea.vmem [#allocation2], %s729
        %v731 = vld [vmem:[%s730] sm:$0xff]
        %v732 = vld [vmem:[%s730 + $0x8] sm:$0xff]
        %v733 = vld [vmem:[%s730 + $0x10] sm:$0xff]
        %v734 = vld [vmem:[%s730 + $0x18] sm:$0xff]
        %v735 = vunpack.c.l.bf16 %v731
        %v736 = vunpack.c.l.bf16 %v732
        %v737 = vunpack.c.l.bf16 %v733
        %v738 = vunpack.c.l.bf16 %v734
        %v739 = vunpack.c.h.bf16 %v731
        %v740 = vunpack.c.h.bf16 %v732
        %v741 = vunpack.c.h.bf16 %v733
        %v742 = vunpack.c.h.bf16 %v734
        %v743 = vadd.f32 %v735, %v707
        %v744 = vadd.f32 %v736, %v711
        %v745 = vadd.f32 %v737, %v715
        %v746 = vadd.f32 %v738, %v719
        %v747 = vadd.f32 %v739, %v707
        %v748 = vadd.f32 %v740, %v711
        %v749 = vadd.f32 %v741, %v715
        %v750 = vadd.f32 %v742, %v719
        %v751 = vpack.c.bf16 %v725, %v724
        %v752 = vld [vmem:[#allocation10] sm:$0xff]
        %v753 = vld [vmem:[#allocation10 + $0x8] sm:$0xff]
        %v754 = vld [vmem:[#allocation10 + $0x10] sm:$0xff]
        %v755 = vld [vmem:[#allocation10 + $0x18] sm:$0xff]
        %v756 = vld [vmem:[#allocation10 + $0x20] sm:$0xff]
        %v757 = vld [vmem:[#allocation10 + $0x28] sm:$0xff]
        %v758 = vld [vmem:[#allocation10 + $0x30] sm:$0xff]
        %v759 = vld [vmem:[#allocation10 + $0x38] sm:$0xff]
        %v760 = vld [vmem:[#allocation10 + $0x40] sm:$0xff]
        %v761 = vld [vmem:[#allocation10 + $0x48] sm:$0xff]
        %v762 = vld [vmem:[#allocation10 + $0x50] sm:$0xff]
        %v763 = vld [vmem:[#allocation10 + $0x58] sm:$0xff]
        %v764 = vld [vmem:[#allocation10 + $0x60] sm:$0xff]
        %v765 = vld [vmem:[#allocation10 + $0x68] sm:$0xff]
        %v766 = vld [vmem:[#allocation10 + $0x70] sm:$0xff]
        %v767 = vld [vmem:[#allocation10 + $0x78] sm:$0xff]
        %v768 = vld [vmem:[#allocation10 + $0x80] sm:$0xff]
        %v769 = vld [vmem:[#allocation10 + $0x88] sm:$0xff]
        %v770 = vld [vmem:[#allocation10 + $0x90] sm:$0xff]
        %v771 = vld [vmem:[#allocation10 + $0x98] sm:$0xff]
        %v772 = vld [vmem:[#allocation10 + $0xa0] sm:$0xff]
        %v773 = vld [vmem:[#allocation10 + $0xa8] sm:$0xff]
        %v774 = vld [vmem:[#allocation10 + $0xb0] sm:$0xff]
        %v775 = vld [vmem:[#allocation10 + $0xb8] sm:$0xff]
        %v776 = vld [vmem:[#allocation10 + $0xc0] sm:$0xff]
        %v777 = vld [vmem:[#allocation10 + $0xc8] sm:$0xff]
        %v778 = vld [vmem:[#allocation10 + $0xd0] sm:$0xff]
        %v779 = vld [vmem:[#allocation10 + $0xd8] sm:$0xff]
        %v780 = vld [vmem:[#allocation10 + $0xe0] sm:$0xff]
        %v781 = vld [vmem:[#allocation10 + $0xe8] sm:$0xff]
        %v782 = vld [vmem:[#allocation10 + $0xf0] sm:$0xff]
        %v783 = vld [vmem:[#allocation10 + $0xf8] sm:$0xff]
        %v816 = vunpack.c.l.b16 %v752
        %v817 = vunpack.c.h.b16 %v752
        %v818 = vunpack.c.l.b16 %v753
        %v819 = vunpack.c.h.b16 %v753
        %v820 = vunpack.c.l.b16 %v754
        %v821 = vunpack.c.h.b16 %v754
        %v822 = vunpack.c.l.b16 %v755
        %v823 = vunpack.c.h.b16 %v755
        %v824 = vunpack.c.l.b16 %v756
        %v825 = vunpack.c.h.b16 %v756
        %v826 = vunpack.c.l.b16 %v757
        %v827 = vunpack.c.h.b16 %v757
        %v828 = vunpack.c.l.b16 %v758
        %v829 = vunpack.c.h.b16 %v758
        %v830 = vunpack.c.l.b16 %v759
        %v831 = vunpack.c.h.b16 %v759
        %v832 = vunpack.c.l.b16 %v760
        %v833 = vunpack.c.h.b16 %v760
        %v834 = vunpack.c.l.b16 %v761
        %v835 = vunpack.c.h.b16 %v761
        %v836 = vunpack.c.l.b16 %v762
        %v837 = vunpack.c.h.b16 %v762
        %v838 = vunpack.c.l.b16 %v763
        %v839 = vunpack.c.h.b16 %v763
        %v840 = vunpack.c.l.b16 %v764
        %v841 = vunpack.c.h.b16 %v764
        %v842 = vunpack.c.l.b16 %v765
        %v843 = vunpack.c.h.b16 %v765
        %v844 = vunpack.c.l.b16 %v766
        %v845 = vunpack.c.h.b16 %v766
        %v846 = vunpack.c.l.b16 %v767
        %v847 = vunpack.c.h.b16 %v767
        %v848 = vunpack.c.l.b16 %v768
        %v849 = vunpack.c.h.b16 %v768
        %v850 = vunpack.c.l.b16 %v769
        %v851 = vunpack.c.h.b16 %v769
        %v852 = vunpack.c.l.b16 %v770
        %v853 = vunpack.c.h.b16 %v770
        %v854 = vunpack.c.l.b16 %v771
        %v855 = vunpack.c.h.b16 %v771
        %v856 = vunpack.c.l.b16 %v772
        %v857 = vunpack.c.h.b16 %v772
        %v858 = vunpack.c.l.b16 %v773
        %v859 = vunpack.c.h.b16 %v773
        %v860 = vunpack.c.l.b16 %v774
        %v861 = vunpack.c.h.b16 %v774
        %v862 = vunpack.c.l.b16 %v775
        %v863 = vunpack.c.h.b16 %v775
        %v864 = vunpack.c.l.b16 %v776
        %v865 = vunpack.c.h.b16 %v776
        %v866 = vunpack.c.l.b16 %v777
        %v867 = vunpack.c.h.b16 %v777
        %v868 = vunpack.c.l.b16 %v778
        %v869 = vunpack.c.h.b16 %v778
        %v870 = vunpack.c.l.b16 %v779
        %v871 = vunpack.c.h.b16 %v779
        %v872 = vunpack.c.l.b16 %v780
        %v873 = vunpack.c.h.b16 %v780
        %v874 = vunpack.c.l.b16 %v781
        %v875 = vunpack.c.h.b16 %v781
        %v876 = vunpack.c.l.b16 %v782
        %v877 = vunpack.c.h.b16 %v782
        %v878 = vunpack.c.l.b16 %v783
        %v879 = vunpack.c.h.b16 %v783
        %v880 = vpack.c.b16 %v820, %v816
        %v881 = vpack.c.b16 %v821, %v817
        %v882 = vpack.c.b16 %v822, %v818
        %v883 = vpack.c.b16 %v823, %v819
        %v884 = vpack.c.b16 %v828, %v824
        %v885 = vpack.c.b16 %v829, %v825
        %v886 = vpack.c.b16 %v830, %v826
        %v887 = vpack.c.b16 %v831, %v827
        %v888 = vpack.c.b16 %v836, %v832
        %v889 = vpack.c.b16 %v837, %v833
        %v890 = vpack.c.b16 %v838, %v834
        %v891 = vpack.c.b16 %v839, %v835
        %v892 = vpack.c.b16 %v844, %v840
        %v893 = vpack.c.b16 %v845, %v841
        %v894 = vpack.c.b16 %v846, %v842
        %v895 = vpack.c.b16 %v847, %v843
        %v896 = vpack.c.b16 %v852, %v848
        %v897 = vpack.c.b16 %v853, %v849
        %v898 = vpack.c.b16 %v854, %v850
        %v899 = vpack.c.b16 %v855, %v851
        %v900 = vpack.c.b16 %v860, %v856
        %v901 = vpack.c.b16 %v861, %v857
        %v902 = vpack.c.b16 %v862, %v858
        %v903 = vpack.c.b16 %v863, %v859
        %v904 = vpack.c.b16 %v868, %v864
        %v905 = vpack.c.b16 %v869, %v865
        %v906 = vpack.c.b16 %v870, %v866
        %v907 = vpack.c.b16 %v871, %v867
        %v908 = vpack.c.b16 %v876, %v872
        %v909 = vpack.c.b16 %v877, %v873
        %v910 = vpack.c.b16 %v878, %v874
        %v911 = vpack.c.b16 %v879, %v875
        %944 = vmatprep.subr.bf16.mxu0 %v881
        %945 = vmatpush1.bf16.msra.mxu0 %v880
        %946 = vmatprep.subr.bf16.mxu0 %v885
        %947 = vmatpush1.bf16.msra.mxu0 %v884
        %948 = vmatprep.subr.bf16.mxu0 %v889
        %949 = vmatpush1.bf16.msra.mxu0 %v888
        %950 = vmatprep.subr.bf16.mxu0 %v893
        %951 = vmatpush1.bf16.msra.mxu0 %v892
        %952 = vmatprep.subr.bf16.mxu0 %v897
        %953 = vmatpush1.bf16.msra.mxu0 %v896
        %954 = vmatprep.subr.bf16.mxu0 %v901
        %955 = vmatpush1.bf16.msra.mxu0 %v900
        %956 = vmatprep.subr.bf16.mxu0 %v905
        %957 = vmatpush1.bf16.msra.mxu0 %v904
        %958 = vmatprep.subr.bf16.mxu0 %v909
        %959 = vmatpush1.bf16.msra.mxu0 %v908
        %960 = vmatprep.subr.bf16.mxu0 0
        %961 = vmatpush1.bf16.msra.mxu0 0
        %962 = vmatprep.subr.bf16.mxu0 0
        %963 = vmatpush1.bf16.msra.mxu0 0
        %964 = vmatprep.subr.bf16.mxu0 0
        %965 = vmatpush1.bf16.msra.mxu0 0
        %966 = vmatprep.subr.bf16.mxu0 0
        %967 = vmatpush1.bf16.msra.mxu0 0
        %968 = vmatprep.subr.bf16.mxu0 0
        %969 = vmatpush1.bf16.msra.mxu0 0
        %970 = vmatprep.subr.bf16.mxu0 0
        %971 = vmatpush1.bf16.msra.mxu0 0
        %972 = vmatprep.subr.bf16.mxu0 0
        %973 = vmatpush1.bf16.msra.mxu0 0
        %974 = vmatprep.subr.bf16.mxu0 0
        %975 = vmatpush1.bf16.msra.mxu0 0
        %976 = vmatprep.mubr.bf16.mxu0 0
        %977 = vmatmul.mubr.bf16.gmra.mrb[0].mxu0 %v751
        %v978 = vpop.f32.mrb[0].mxu0
        %v979 = vadd.f32 0.0, %v978
        %v980 = vpop.f32.mrb[0].mxu0
        %v981 = vadd.f32 0.0, %v980
        %v982 = vpop.f32.mrb[0].mxu0
        %v983 = vadd.f32 0.0, %v982
        %v984 = vpop.f32.mrb[0].mxu0
        %v985 = vadd.f32 0.0, %v984
        %986 = vdwg.mxu0
        %987 = vmatprep.subr.bf16.mxu0 %v883
        %988 = vmatpush1.bf16.msra.mxu0 %v882
        %989 = vmatprep.subr.bf16.mxu0 %v887
        %990 = vmatpush1.bf16.msra.mxu0 %v886
        %991 = vmatprep.subr.bf16.mxu0 %v891
        %992 = vmatpush1.bf16.msra.mxu0 %v890
        %993 = vmatprep.subr.bf16.mxu0 %v895
        %994 = vmatpush1.bf16.msra.mxu0 %v894
        %995 = vmatprep.subr.bf16.mxu0 %v899
        %996 = vmatpush1.bf16.msra.mxu0 %v898
        %997 = vmatprep.subr.bf16.mxu0 %v903
        %998 = vmatpush1.bf16.msra.mxu0 %v902
        %999 = vmatprep.subr.bf16.mxu0 %v907
        %1000 = vmatpush1.bf16.msra.mxu0 %v906
        %1001 = vmatprep.subr.bf16.mxu0 %v911
        %1002 = vmatpush1.bf16.msra.mxu0 %v910
        %1003 = vmatprep.subr.bf16.mxu0 0
        %1004 = vmatpush1.bf16.msra.mxu0 0
        %1005 = vmatprep.subr.bf16.mxu0 0
        %1006 = vmatpush1.bf16.msra.mxu0 0
        %1007 = vmatprep.subr.bf16.mxu0 0
        %1008 = vmatpush1.bf16.msra.mxu0 0
        %1009 = vmatprep.subr.bf16.mxu0 0
        %1010 = vmatpush1.bf16.msra.mxu0 0
        %1011 = vmatprep.subr.bf16.mxu0 0
        %1012 = vmatpush1.bf16.msra.mxu0 0
        %1013 = vmatprep.subr.bf16.mxu0 0
        %1014 = vmatpush1.bf16.msra.mxu0 0
        %1015 = vmatprep.subr.bf16.mxu0 0
        %1016 = vmatpush1.bf16.msra.mxu0 0
        %1017 = vmatprep.subr.bf16.mxu0 0
        %1018 = vmatpush1.bf16.msra.mxu0 0
        %1019 = vmatprep.mubr.bf16.mxu0 0
        %1020 = vmatmul.mubr.bf16.gmra.mrb[0].mxu0 %v751
        %v1021 = vpop.f32.mrb[0].mxu0
        %v1022 = vadd.f32 0.0, %v1021
        %v1023 = vpop.f32.mrb[0].mxu0
        %v1024 = vadd.f32 0.0, %v1023
        %v1025 = vpop.f32.mrb[0].mxu0
        %v1026 = vadd.f32 0.0, %v1025
        %v1027 = vpop.f32.mrb[0].mxu0
        %v1028 = vadd.f32 0.0, %v1027
        %1029 = vdwg.mxu0
        %v1030 = vadd.f32 %v743, %v979
        %v1031 = vadd.f32 %v744, %v981
        %v1032 = vadd.f32 %v745, %v1022
        %v1033 = vadd.f32 %v746, %v1024
        %v1034 = vadd.f32 %v747, %v983
        %v1035 = vadd.f32 %v748, %v985
        %v1036 = vadd.f32 %v749, %v1026
        %v1037 = vadd.f32 %v750, %v1028
        %v1038 = vxor.u32 %v1030, 2147483648
        %v1039 = vxor.u32 %v1034, 2147483648
        %v1040 = vmul.f32 %v1038, 1.442695
        %v1041 = vpow.pop %v1040
        %v1042 = vmul.f32 %v1039, 1.442695
        %v1043 = vpow.pop %v1042
        %v1044 = vadd.f32 %v1041, 1.0
        %v1045 = vadd.f32 %v1043, 1.0
        %v1046 = vrcp.pop %v1044
        %v1047 = vmul.f32 1.0, %v1046
        %v1048 = vrcp.pop %v1045
        %v1049 = vmul.f32 1.0, %v1048
        %v1050 = vxor.u32 %v1031, 2147483648
        %v1051 = vxor.u32 %v1035, 2147483648
        %v1052 = vmul.f32 %v1050, 1.442695
        %v1053 = vpow.pop %v1052
        %v1054 = vmul.f32 %v1051, 1.442695
        %v1055 = vpow.pop %v1054
        %v1056 = vadd.f32 %v1053, 1.0
        %v1057 = vadd.f32 %v1055, 1.0
        %v1058 = vrcp.pop %v1056
        %v1059 = vmul.f32 1.0, %v1058
        %v1060 = vrcp.pop %v1057
        %v1061 = vmul.f32 1.0, %v1060
        %v1062 = vtanh.pop %v1032
        %v1063 = vtanh.pop %v1036
        %v1064 = vxor.u32 %v1033, 2147483648
        %v1065 = vxor.u32 %v1037, 2147483648
        %v1066 = vmul.f32 %v1064, 1.442695
        %v1067 = vpow.pop %v1066
        %v1068 = vmul.f32 %v1065, 1.442695
        %v1069 = vpow.pop %v1068
        %v1070 = vadd.f32 %v1067, 1.0
        %v1071 = vadd.f32 %v1069, 1.0
        %v1072 = vrcp.pop %v1070
        %v1073 = vmul.f32 1.0, %v1072
        %v1074 = vrcp.pop %v1071
        %v1075 = vmul.f32 1.0, %v1074
        %v1076 = vmul.f32 %v1059, %v726
        %v1077 = vmul.f32 %v1061, %v727
        %v1078 = vmul.f32 %v1047, %v1062
        %v1079 = vmul.f32 %v1049, %v1063
        %v1080 = vadd.f32 %v1076, %v1078
        %v1081 = vadd.f32 %v1077, %v1079
        %v1082 = vtanh.pop %v1080
        %v1083 = vtanh.pop %v1081
        %v1084 = vmul.f32 %v1073, %v1082
        %v1085 = vmul.f32 %v1075, %v1083
        %s1086 = smul.u32 %s28, 3
        %p1087 = scmp.lt.s32.totalorder %s1086, 8
        %s1088 = scalar_select %p1087, 1, 0
        %v1089 = vstv %s1088
        %vm1090 = vcmp.eq.s32.totalorder %v1089, 1
        %v1091 = vsel %vm1090, %v1084, %v724
        %v1092 = vsel %vm1090, %v1085, %v725
        %v1093 = vsel %vm1090, %v1080, %v726
        %v1094 = vsel %vm1090, %v1081, %v727
        %s1095 = smul.u32 1, 4
        %s1096 = smul.addr %s1095, 8
        %s1097 = scalar_lea.vmem [#allocation2], %s1096
        %v1098 = vld [vmem:[%s1097] sm:$0xff]
        %v1099 = vld [vmem:[%s1097 + $0x8] sm:$0xff]
        %v1100 = vld [vmem:[%s1097 + $0x10] sm:$0xff]
        %v1101 = vld [vmem:[%s1097 + $0x18] sm:$0xff]
        %v1102 = vunpack.c.l.bf16 %v1098
        %v1103 = vunpack.c.l.bf16 %v1099
        %v1104 = vunpack.c.l.bf16 %v1100
        %v1105 = vunpack.c.l.bf16 %v1101
        %v1106 = vunpack.c.h.bf16 %v1098
        %v1107 = vunpack.c.h.bf16 %v1099
        %v1108 = vunpack.c.h.bf16 %v1100
        %v1109 = vunpack.c.h.bf16 %v1101
        %v1110 = vadd.f32 %v1102, %v707
        %v1111 = vadd.f32 %v1103, %v711
        %v1112 = vadd.f32 %v1104, %v715
        %v1113 = vadd.f32 %v1105, %v719
        %v1114 = vadd.f32 %v1106, %v707
        %v1115 = vadd.f32 %v1107, %v711
        %v1116 = vadd.f32 %v1108, %v715
        %v1117 = vadd.f32 %v1109, %v719
        %v1118 = vpack.c.bf16 %v1092, %v1091
        %1119 = vmatprep.subr.bf16.mxu0 %v881
        %1120 = vmatpush1.bf16.msra.mxu0 %v880
        %1121 = vmatprep.subr.bf16.mxu0 %v885
        %1122 = vmatpush1.bf16.msra.mxu0 %v884
        %1123 = vmatprep.subr.bf16.mxu0 %v889
        %1124 = vmatpush1.bf16.msra.mxu0 %v888
        %1125 = vmatprep.subr.bf16.mxu0 %v893
        %1126 = vmatpush1.bf16.msra.mxu0 %v892
        %1127 = vmatprep.subr.bf16.mxu0 %v897
        %1128 = vmatpush1.bf16.msra.mxu0 %v896
        %1129 = vmatprep.subr.bf16.mxu0 %v901
        %1130 = vmatpush1.bf16.msra.mxu0 %v900
        %1131 = vmatprep.subr.bf16.mxu0 %v905
        %1132 = vmatpush1.bf16.msra.mxu0 %v904
        %1133 = vmatprep.subr.bf16.mxu0 %v909
        %1134 = vmatpush1.bf16.msra.mxu0 %v908
        %1135 = vmatprep.subr.bf16.mxu0 0
        %1136 = vmatpush1.bf16.msra.mxu0 0
        %1137 = vmatprep.subr.bf16.mxu0 0
        %1138 = vmatpush1.bf16.msra.mxu0 0
        %1139 = vmatprep.subr.bf16.mxu0 0
        %1140 = vmatpush1.bf16.msra.mxu0 0
        %1141 = vmatprep.subr.bf16.mxu0 0
        %1142 = vmatpush1.bf16.msra.mxu0 0
        %1143 = vmatprep.subr.bf16.mxu0 0
        %1144 = vmatpush1.bf16.msra.mxu0 0
        %1145 = vmatprep.subr.bf16.mxu0 0
        %1146 = vmatpush1.bf16.msra.mxu0 0
        %1147 = vmatprep.subr.bf16.mxu0 0
        %1148 = vmatpush1.bf16.msra.mxu0 0
        %1149 = vmatprep.subr.bf16.mxu0 0
        %1150 = vmatpush1.bf16.msra.mxu0 0
        %1151 = vmatprep.mubr.bf16.mxu0 0
        %1152 = vmatmul.mubr.bf16.gmra.mrb[0].mxu0 %v1118
        %v1153 = vpop.f32.mrb[0].mxu0
        %v1154 = vadd.f32 0.0, %v1153
        %v1155 = vpop.f32.mrb[0].mxu0
        %v1156 = vadd.f32 0.0, %v1155
        %v1157 = vpop.f32.mrb[0].mxu0
        %v1158 = vadd.f32 0.0, %v1157
        %v1159 = vpop.f32.mrb[0].mxu0
        %v1160 = vadd.f32 0.0, %v1159
        %1161 = vdwg.mxu0
        %1162 = vmatprep.subr.bf16.mxu0 %v883
        %1163 = vmatpush1.bf16.msra.mxu0 %v882
        %1164 = vmatprep.subr.bf16.mxu0 %v887
        %1165 = vmatpush1.bf16.msra.mxu0 %v886
        %1166 = vmatprep.subr.bf16.mxu0 %v891
        %1167 = vmatpush1.bf16.msra.mxu0 %v890
        %1168 = vmatprep.subr.bf16.mxu0 %v895
        %1169 = vmatpush1.bf16.msra.mxu0 %v894
        %1170 = vmatprep.subr.bf16.mxu0 %v899
        %1171 = vmatpush1.bf16.msra.mxu0 %v898
        %1172 = vmatprep.subr.bf16.mxu0 %v903
        %1173 = vmatpush1.bf16.msra.mxu0 %v902
        %1174 = vmatprep.subr.bf16.mxu0 %v907
        %1175 = vmatpush1.bf16.msra.mxu0 %v906
        %1176 = vmatprep.subr.bf16.mxu0 %v911
        %1177 = vmatpush1.bf16.msra.mxu0 %v910
        %1178 = vmatprep.subr.bf16.mxu0 0
        %1179 = vmatpush1.bf16.msra.mxu0 0
        %1180 = vmatprep.subr.bf16.mxu0 0
        %1181 = vmatpush1.bf16.msra.mxu0 0
        %1182 = vmatprep.subr.bf16.mxu0 0
        %1183 = vmatpush1.bf16.msra.mxu0 0
        %1184 = vmatprep.subr.bf16.mxu0 0
        %1185 = vmatpush1.bf16.msra.mxu0 0
        %1186 = vmatprep.subr.bf16.mxu0 0
        %1187 = vmatpush1.bf16.msra.mxu0 0
        %1188 = vmatprep.subr.bf16.mxu0 0
        %1189 = vmatpush1.bf16.msra.mxu0 0
        %1190 = vmatprep.subr.bf16.mxu0 0
        %1191 = vmatpush1.bf16.msra.mxu0 0
        %1192 = vmatprep.subr.bf16.mxu0 0
        %1193 = vmatpush1.bf16.msra.mxu0 0
        %1194 = vmatprep.mubr.bf16.mxu0 0
        %1195 = vmatmul.mubr.bf16.gmra.mrb[0].mxu0 %v1118
        %v1196 = vpop.f32.mrb[0].mxu0
        %v1197 = vadd.f32 0.0, %v1196
        %v1198 = vpop.f32.mrb[0].mxu0
        %v1199 = vadd.f32 0.0, %v1198
        %v1200 = vpop.f32.mrb[0].mxu0
        %v1201 = vadd.f32 0.0, %v1200
        %v1202 = vpop.f32.mrb[0].mxu0
        %v1203 = vadd.f32 0.0, %v1202
        %1204 = vdwg.mxu0
        %v1205 = vadd.f32 %v1110, %v1154
        %v1206 = vadd.f32 %v1111, %v1156
        %v1207 = vadd.f32 %v1112, %v1197
        %v1208 = vadd.f32 %v1113, %v1199
        %v1209 = vadd.f32 %v1114, %v1158
        %v1210 = vadd.f32 %v1115, %v1160
        %v1211 = vadd.f32 %v1116, %v1201
        %v1212 = vadd.f32 %v1117, %v1203
        %v1213 = vxor.u32 %v1205, 2147483648
        %v1214 = vxor.u32 %v1209, 2147483648
        %v1215 = vmul.f32 %v1213, 1.442695
        %v1216 = vpow.pop %v1215
        %v1217 = vmul.f32 %v1214, 1.442695
        %v1218 = vpow.pop %v1217
        %v1219 = vadd.f32 %v1216, 1.0
        %v1220 = vadd.f32 %v1218, 1.0
        %v1221 = vrcp.pop %v1219
        %v1222 = vmul.f32 1.0, %v1221
        %v1223 = vrcp.pop %v1220
        %v1224 = vmul.f32 1.0, %v1223
        %v1225 = vxor.u32 %v1206, 2147483648
        %v1226 = vxor.u32 %v1210, 2147483648
        %v1227 = vmul.f32 %v1225, 1.442695
        %v1228 = vpow.pop %v1227
        %v1229 = vmul.f32 %v1226, 1.442695
        %v1230 = vpow.pop %v1229
        %v1231 = vadd.f32 %v1228, 1.0
        %v1232 = vadd.f32 %v1230, 1.0
        %v1233 = vrcp.pop %v1231
        %v1234 = vmul.f32 1.0, %v1233
        %v1235 = vrcp.pop %v1232
        %v1236 = vmul.f32 1.0, %v1235
        %v1237 = vtanh.pop %v1207
        %v1238 = vtanh.pop %v1211
        %v1239 = vxor.u32 %v1208, 2147483648
        %v1240 = vxor.u32 %v1212, 2147483648
        %v1241 = vmul.f32 %v1239, 1.442695
        %v1242 = vpow.pop %v1241
        %v1243 = vmul.f32 %v1240, 1.442695
        %v1244 = vpow.pop %v1243
        %v1245 = vadd.f32 %v1242, 1.0
        %v1246 = vadd.f32 %v1244, 1.0
        %v1247 = vrcp.pop %v1245
        %v1248 = vmul.f32 1.0, %v1247
        %v1249 = vrcp.pop %v1246
        %v1250 = vmul.f32 1.0, %v1249
        %v1251 = vmul.f32 %v1234, %v1093
        %v1252 = vmul.f32 %v1236, %v1094
        %v1253 = vmul.f32 %v1222, %v1237
        %v1254 = vmul.f32 %v1224, %v1238
        %v1255 = vadd.f32 %v1251, %v1253
        %v1256 = vadd.f32 %v1252, %v1254
        %v1257 = vtanh.pop %v1255
        %v1258 = vtanh.pop %v1256
        %v1259 = vmul.f32 %v1248, %v1257
        %v1260 = vmul.f32 %v1250, %v1258
        %s1261 = sadd.s32 %s1086, 1
        %p1262 = scmp.lt.s32.totalorder %s1261, 8
        %s1263 = scalar_select %p1262, 1, 0
        %v1264 = vstv %s1263
        %vm1265 = vcmp.eq.s32.totalorder %v1264, 1
        %v1266 = vsel %vm1265, %v1259, %v1091
        %v1267 = vsel %vm1265, %v1260, %v1092
        %v1268 = vsel %vm1265, %v1255, %v1093
        %v1269 = vsel %vm1265, %v1256, %v1094
        %s1270 = smul.u32 2, 4
        %s1271 = smul.addr %s1270, 8
        %s1272 = scalar_lea.vmem [#allocation2], %s1271
        %v1273 = vld [vmem:[%s1272] sm:$0xff]
        %v1274 = vld [vmem:[%s1272 + $0x8] sm:$0xff]
        %v1275 = vld [vmem:[%s1272 + $0x10] sm:$0xff]
        %v1276 = vld [vmem:[%s1272 + $0x18] sm:$0xff]
        %v1277 = vunpack.c.l.bf16 %v1273
        %v1278 = vunpack.c.l.bf16 %v1274
        %v1279 = vunpack.c.l.bf16 %v1275
        %v1280 = vunpack.c.l.bf16 %v1276
        %v1281 = vunpack.c.h.bf16 %v1273
        %v1282 = vunpack.c.h.bf16 %v1274
        %v1283 = vunpack.c.h.bf16 %v1275
        %v1284 = vunpack.c.h.bf16 %v1276
        %v1285 = vadd.f32 %v1277, %v707
        %v1286 = vadd.f32 %v1278, %v711
        %v1287 = vadd.f32 %v1279, %v715
        %v1288 = vadd.f32 %v1280, %v719
        %v1289 = vadd.f32 %v1281, %v707
        %v1290 = vadd.f32 %v1282, %v711
        %v1291 = vadd.f32 %v1283, %v715
        %v1292 = vadd.f32 %v1284, %v719
        %v1293 = vpack.c.bf16 %v1267, %v1266
        %1294 = vmatprep.subr.bf16.mxu0 %v881
        %1295 = vmatpush1.bf16.msra.mxu0 %v880
        %1296 = vmatprep.subr.bf16.mxu0 %v885
        %1297 = vmatpush1.bf16.msra.mxu0 %v884
        %1298 = vmatprep.subr.bf16.mxu0 %v889
        %1299 = vmatpush1.bf16.msra.mxu0 %v888
        %1300 = vmatprep.subr.bf16.mxu0 %v893
        %1301 = vmatpush1.bf16.msra.mxu0 %v892
        %1302 = vmatprep.subr.bf16.mxu0 %v897
        %1303 = vmatpush1.bf16.msra.mxu0 %v896
        %1304 = vmatprep.subr.bf16.mxu0 %v901
        %1305 = vmatpush1.bf16.msra.mxu0 %v900
        %1306 = vmatprep.subr.bf16.mxu0 %v905
        %1307 = vmatpush1.bf16.msra.mxu0 %v904
        %1308 = vmatprep.subr.bf16.mxu0 %v909
        %1309 = vmatpush1.bf16.msra.mxu0 %v908
        %1310 = vmatprep.subr.bf16.mxu0 0
        %1311 = vmatpush1.bf16.msra.mxu0 0
        %1312 = vmatprep.subr.bf16.mxu0 0
        %1313 = vmatpush1.bf16.msra.mxu0 0
        %1314 = vmatprep.subr.bf16.mxu0 0
        %1315 = vmatpush1.bf16.msra.mxu0 0
        %1316 = vmatprep.subr.bf16.mxu0 0
        %1317 = vmatpush1.bf16.msra.mxu0 0
        %1318 = vmatprep.subr.bf16.mxu0 0
        %1319 = vmatpush1.bf16.msra.mxu0 0
        %1320 = vmatprep.subr.bf16.mxu0 0
        %1321 = vmatpush1.bf16.msra.mxu0 0
        %1322 = vmatprep.subr.bf16.mxu0 0
        %1323 = vmatpush1.bf16.msra.mxu0 0
        %1324 = vmatprep.subr.bf16.mxu0 0
        %1325 = vmatpush1.bf16.msra.mxu0 0
        %1326 = vmatprep.mubr.bf16.mxu0 0
        %1327 = vmatmul.mubr.bf16.gmra.mrb[0].mxu0 %v1293
        %v1328 = vpop.f32.mrb[0].mxu0
        %v1329 = vadd.f32 0.0, %v1328
        %v1330 = vpop.f32.mrb[0].mxu0
        %v1331 = vadd.f32 0.0, %v1330
        %v1332 = vpop.f32.mrb[0].mxu0
        %v1333 = vadd.f32 0.0, %v1332
        %v1334 = vpop.f32.mrb[0].mxu0
        %v1335 = vadd.f32 0.0, %v1334
        %1336 = vdwg.mxu0
        %1337 = vmatprep.subr.bf16.mxu0 %v883
        %1338 = vmatpush1.bf16.msra.mxu0 %v882
        %1339 = vmatprep.subr.bf16.mxu0 %v887
        %1340 = vmatpush1.bf16.msra.mxu0 %v886
        %1341 = vmatprep.subr.bf16.mxu0 %v891
        %1342 = vmatpush1.bf16.msra.mxu0 %v890
        %1343 = vmatprep.subr.bf16.mxu0 %v895
        %1344 = vmatpush1.bf16.msra.mxu0 %v894
        %1345 = vmatprep.subr.bf16.mxu0 %v899
        %1346 = vmatpush1.bf16.msra.mxu0 %v898
        %1347 = vmatprep.subr.bf16.mxu0 %v903
        %1348 = vmatpush1.bf16.msra.mxu0 %v902
        %1349 = vmatprep.subr.bf16.mxu0 %v907
        %1350 = vmatpush1.bf16.msra.mxu0 %v906
        %1351 = vmatprep.subr.bf16.mxu0 %v911
        %1352 = vmatpush1.bf16.msra.mxu0 %v910
        %1353 = vmatprep.subr.bf16.mxu0 0
        %1354 = vmatpush1.bf16.msra.mxu0 0
        %1355 = vmatprep.subr.bf16.mxu0 0
        %1356 = vmatpush1.bf16.msra.mxu0 0
        %1357 = vmatprep.subr.bf16.mxu0 0
        %1358 = vmatpush1.bf16.msra.mxu0 0
        %1359 = vmatprep.subr.bf16.mxu0 0
        %1360 = vmatpush1.bf16.msra.mxu0 0
        %1361 = vmatprep.subr.bf16.mxu0 0
        %1362 = vmatpush1.bf16.msra.mxu0 0
        %1363 = vmatprep.subr.bf16.mxu0 0
        %1364 = vmatpush1.bf16.msra.mxu0 0
        %1365 = vmatprep.subr.bf16.mxu0 0
        %1366 = vmatpush1.bf16.msra.mxu0 0
        %1367 = vmatprep.subr.bf16.mxu0 0
        %1368 = vmatpush1.bf16.msra.mxu0 0
        %1369 = vmatprep.mubr.bf16.mxu0 0
        %1370 = vmatmul.mubr.bf16.gmra.mrb[0].mxu0 %v1293
        %v1371 = vpop.f32.mrb[0].mxu0
        %v1372 = vadd.f32 0.0, %v1371
        %v1373 = vpop.f32.mrb[0].mxu0
        %v1374 = vadd.f32 0.0, %v1373
        %v1375 = vpop.f32.mrb[0].mxu0
        %v1376 = vadd.f32 0.0, %v1375
        %v1377 = vpop.f32.mrb[0].mxu0
        %v1378 = vadd.f32 0.0, %v1377
        %1379 = vdwg.mxu0
        %v1380 = vadd.f32 %v1285, %v1329
        %v1381 = vadd.f32 %v1286, %v1331
        %v1382 = vadd.f32 %v1287, %v1372
        %v1383 = vadd.f32 %v1288, %v1374
        %v1384 = vadd.f32 %v1289, %v1333
        %v1385 = vadd.f32 %v1290, %v1335
        %v1386 = vadd.f32 %v1291, %v1376
        %v1387 = vadd.f32 %v1292, %v1378
        %v1388 = vxor.u32 %v1380, 2147483648
        %v1389 = vxor.u32 %v1384, 2147483648
        %v1390 = vmul.f32 %v1388, 1.442695
        %v1391 = vpow.pop %v1390
        %v1392 = vmul.f32 %v1389, 1.442695
        %v1393 = vpow.pop %v1392
        %v1394 = vadd.f32 %v1391, 1.0
        %v1395 = vadd.f32 %v1393, 1.0
        %v1396 = vrcp.pop %v1394
        %v1397 = vmul.f32 1.0, %v1396
        %v1398 = vrcp.pop %v1395
        %v1399 = vmul.f32 1.0, %v1398
        %v1400 = vxor.u32 %v1381, 2147483648
        %v1401 = vxor.u32 %v1385, 2147483648
        %v1402 = vmul.f32 %v1400, 1.442695
        %v1403 = vpow.pop %v1402
        %v1404 = vmul.f32 %v1401, 1.442695
        %v1405 = vpow.pop %v1404
        %v1406 = vadd.f32 %v1403, 1.0
        %v1407 = vadd.f32 %v1405, 1.0
        %v1408 = vrcp.pop %v1406
        %v1409 = vmul.f32 1.0, %v1408
        %v1410 = vrcp.pop %v1407
        %v1411 = vmul.f32 1.0, %v1410
        %v1412 = vtanh.pop %v1382
        %v1413 = vtanh.pop %v1386
        %v1414 = vxor.u32 %v1383, 2147483648
        %v1415 = vxor.u32 %v1387, 2147483648
        %v1416 = vmul.f32 %v1414, 1.442695
        %v1417 = vpow.pop %v1416
        %v1418 = vmul.f32 %v1415, 1.442695
        %v1419 = vpow.pop %v1418
        %v1420 = vadd.f32 %v1417, 1.0
        %v1421 = vadd.f32 %v1419, 1.0
        %v1422 = vrcp.pop %v1420
        %v1423 = vmul.f32 1.0, %v1422
        %v1424 = vrcp.pop %v1421
        %v1425 = vmul.f32 1.0, %v1424
        %v1426 = vmul.f32 %v1409, %v1268
        %v1427 = vmul.f32 %v1411, %v1269
        %v1428 = vmul.f32 %v1397, %v1412
        %v1429 = vmul.f32 %v1399, %v1413
        %v1430 = vadd.f32 %v1426, %v1428
        %v1431 = vadd.f32 %v1427, %v1429
        %v1432 = vtanh.pop %v1430
        %v1433 = vtanh.pop %v1431
        %v1434 = vmul.f32 %v1423, %v1432
        %v1435 = vmul.f32 %v1425, %v1433
        %s1436 = sadd.s32 %s1086, 2
        %p1437 = scmp.lt.s32.totalorder %s1436, 8
        %s1438 = scalar_select %p1437, 1, 0
        %v1439 = vstv %s1438
        %vm1440 = vcmp.eq.s32.totalorder %v1439, 1
        %v1441 = vsel %vm1440, %v1434, %v1266
        %v1442 = vsel %vm1440, %v1435, %v1267
        %v1443 = vsel %vm1440, %v1430, %v1268
        %v1444 = vsel %vm1440, %v1431, %v1269
        %1445 = vst [vmem:[#allocation3] sm:$0xff] %v1441
        %1446 = vst [vmem:[#allocation3 + $0x8] sm:$0xff] %v1442
        %1447 = vst [vmem:[#allocation4] sm:$0xff] %v1443
        %1448 = vst [vmem:[#allocation4 + $0x8] sm:$0xff] %v1444
        %p1449 = scmp.eq.s32.totalorder %s28, 2
        // Predicated region
        $region65: #{tpu_custom_call.1} parent=43 // pred_check
          %p1450 = pneg %p1449
        $region66: #{tpu_custom_call.1} parent=43 // pred_check_branch
          %1452 = sbr.rel (%p1450) target = $region68
        $region67: #{tpu_custom_call.1} parent=43 // pred_region
          %v1453 = vpack.c.bf16 %v1442, %v1441
          %v1454 = vld [vmem:[#allocation11] sm:$0xf]
          %v1455 = vld [vmem:[#allocation11 + $0x4] sm:$0xf]
          %v1456 = vld [vmem:[#allocation11 + $0x8] sm:$0xf]
          %v1457 = vld [vmem:[#allocation11 + $0xc] sm:$0xf]
          %v1458 = vld [vmem:[#allocation11 + $0x10] sm:$0xf]
          %v1459 = vld [vmem:[#allocation11 + $0x14] sm:$0xf]
          %v1460 = vld [vmem:[#allocation11 + $0x18] sm:$0xf]
          %v1461 = vld [vmem:[#allocation11 + $0x1c] sm:$0xf]
          %v1462 = vld [vmem:[#allocation11 + $0x20] sm:$0xf]
          %v1463 = vld [vmem:[#allocation11 + $0x24] sm:$0xf]
          %v1464 = vld [vmem:[#allocation11 + $0x28] sm:$0xf]
          %v1465 = vld [vmem:[#allocation11 + $0x2c] sm:$0xf]
          %v1466 = vld [vmem:[#allocation11 + $0x30] sm:$0xf]
          %v1467 = vld [vmem:[#allocation11 + $0x34] sm:$0xf]
          %v1468 = vld [vmem:[#allocation11 + $0x38] sm:$0xf]
          %v1469 = vld [vmem:[#allocation11 + $0x3c] sm:$0xf]
          %v1470 = vld [vmem:[%s5] sm:$0x1]
          %v1472 = vlaneseq
          %v1473 = vshrl.u32 %v1472, 7
          %v1474 = vsub.s32 0, %v1473
          %v1475 = vrot.slane %v1470, %v1474
          %v1493 = vunpack.c.l.b16 %v1454
          %v1494 = vunpack.c.l.b16 %v1455
          %v1495 = vunpack.c.l.b16 %v1456
          %v1496 = vunpack.c.l.b16 %v1457
          %v1497 = vunpack.c.l.b16 %v1458
          %v1498 = vunpack.c.l.b16 %v1459
          %v1499 = vunpack.c.l.b16 %v1460
          %v1500 = vunpack.c.l.b16 %v1461
          %v1501 = vunpack.c.l.b16 %v1462
          %v1502 = vunpack.c.l.b16 %v1463
          %v1503 = vunpack.c.l.b16 %v1464
          %v1504 = vunpack.c.l.b16 %v1465
          %v1505 = vunpack.c.l.b16 %v1466
          %v1506 = vunpack.c.l.b16 %v1467
          %v1507 = vunpack.c.l.b16 %v1468
          %v1508 = vunpack.c.l.b16 %v1469
          %v1509 = vpack.c.b16 %v1494, %v1493
          %v1510 = vpack.c.b16 %v1496, %v1495
          %v1511 = vpack.c.b16 %v1498, %v1497
          %v1512 = vpack.c.b16 %v1500, %v1499
          %v1513 = vpack.c.b16 %v1502, %v1501
          %v1514 = vpack.c.b16 %v1504, %v1503
          %v1515 = vpack.c.b16 %v1506, %v1505
          %v1516 = vpack.c.b16 %v1508, %v1507
          %1525 = vmatprep.subr.bf16.mxu0 0
          %1526 = vmatpush1.bf16.msra.mxu0 %v1509
          %1527 = vmatprep.subr.bf16.mxu0 0
          %1528 = vmatpush1.bf16.msra.mxu0 %v1510
          %1529 = vmatprep.subr.bf16.mxu0 0
          %1530 = vmatpush1.bf16.msra.mxu0 %v1511
          %1531 = vmatprep.subr.bf16.mxu0 0
          %1532 = vmatpush1.bf16.msra.mxu0 %v1512
          %1533 = vmatprep.subr.bf16.mxu0 0
          %1534 = vmatpush1.bf16.msra.mxu0 %v1513
          %1535 = vmatprep.subr.bf16.mxu0 0
          %1536 = vmatpush1.bf16.msra.mxu0 %v1514
          %1537 = vmatprep.subr.bf16.mxu0 0
          %1538 = vmatpush1.bf16.msra.mxu0 %v1515
          %1539 = vmatprep.subr.bf16.mxu0 0
          %1540 = vmatpush1.bf16.msra.mxu0 %v1516
          %1541 = vmatprep.subr.bf16.mxu0 0
          %1542 = vmatpush1.bf16.msra.mxu0 0
          %1543 = vmatprep.subr.bf16.mxu0 0
          %1544 = vmatpush1.bf16.msra.mxu0 0
          %1545 = vmatprep.subr.bf16.mxu0 0
          %1546 = vmatpush1.bf16.msra.mxu0 0
          %1547 = vmatprep.subr.bf16.mxu0 0
          %1548 = vmatpush1.bf16.msra.mxu0 0
          %1549 = vmatprep.subr.bf16.mxu0 0
          %1550 = vmatpush1.bf16.msra.mxu0 0
          %1551 = vmatprep.subr.bf16.mxu0 0
          %1552 = vmatpush1.bf16.msra.mxu0 0
          %1553 = vmatprep.subr.bf16.mxu0 0
          %1554 = vmatpush1.bf16.msra.mxu0 0
          %1555 = vmatprep.subr.bf16.mxu0 0
          %1556 = vmatpush1.bf16.msra.mxu0 0
          %1557 = vmatprep.mubr.bf16.mxu0 0
          %1558 = vmatmul.mubr.bf16.gmra.mrb[0].mxu0 %v1453
          %v1559 = vpop.f32.mrb[0].mxu0
          %v1560 = vadd.f32 %v1475, %v1559
          %v1561 = vpop.f32.mrb[0].mxu0
          %v1562 = vpop.f32.mrb[0].mxu0
          %v1563 = vadd.f32 %v1475, %v1562
          %v1564 = vpop.f32.mrb[0].mxu0
          %1565 = vdwg.mxu0
          %1566 = vmax.xlane.f32.xlu0 %v1560
          %v1567 = vpop.xlane.xlu0 %1566
          %1568 = vmax.xlane.f32.xlu0 %v1563
          %v1569 = vpop.xlane.xlu0 %1568
          %v1570 = vsub.f32 %v1560, %v1567
          %v1571 = vsub.f32 %v1563, %v1569
          %v1572 = vmul.f32 %v1570, 1.442695
          %v1573 = vpow.pop %v1572
          %v1574 = vmul.f32 %v1571, 1.442695
          %v1575 = vpow.pop %v1574
          %1576 = vadd.xlane.f32.xlu0 %v1573
          %v1577 = vpop.xlane.xlu0 %1576
          %1578 = vadd.xlane.f32.xlu0 %v1575
          %v1579 = vpop.xlane.xlu0 %1578
          %v1580 = vlog2.pop %v1577
          %v1581 = vmul.f32 %v1580, 0.6931472
          %v1582 = vlog2.pop %v1579
          %v1583 = vmul.f32 %v1582, 0.6931472
          %v1584 = vsub.f32 %v1570, %v1581
          %v1585 = vsub.f32 %v1571, %v1583
          %1586 = vst [vmem:[#allocation13] sm:$0xff] %v1584
          %1587 = vst [vmem:[#allocation13 + $0x8] sm:$0xff] %v1585
        $region68: #{tpu_custom_call.1} parent=43 // pred_fallthru
          _
        // Predicated region
        $region69: #{tpu_custom_call.1} parent=43 // pred_check
          %p1588 = pneg %p186
        $region70: #{tpu_custom_call.1} parent=43 // pred_check_branch
          %1590 = sbr.rel (%p1588) target = $region72
        $region71: #{tpu_custom_call.1} parent=43 // pred_region
          %s1591 = smul.u32 2, %s27
          %s1593 = ssub.s32 256, 256
          %1594 = vsyncadd [#allocation7], %s1593
          %s1595 = smul.addr %s1591, 128
          %s1596 = scalar_lea.hbm %s6, %s1595
          %s1597 = sshll.u32 [#allocation13], 4
          %s1598 = int_to_ptr.vmem [resolvable:$true] %s1597
          %1603 = dma.vmem_to_hbm [thread:$0]  %s1598, 256, %s1596, [#allocation7], 128, 128, 8
        $region72: #{tpu_custom_call.1} parent=43 // pred_fallthru
          _
        // Predicated region
        $region73: #{tpu_custom_call.1} parent=43 // pred_check
          %p1604 = pneg %p186
        $region74: #{tpu_custom_call.1} parent=43 // pred_check_branch
          %1606 = sbr.rel (%p1604) target = $region76
        $region75: #{tpu_custom_call.1} parent=43 // pred_region
          %1607 = dma.done [#allocation7], 256
        $region76: #{tpu_custom_call.1} parent=43 // pred_fallthru
          _
      $region44: #{tpu_custom_call.1} parent=5 // pred_fallthru
        _
      %p1608 = scmp.le.s32.totalorder 2, %s18
      // Predicated region
      $region77: #{tpu_custom_call.1} parent=5 // pred_check
        %p1609 = pneg %p1608
      $region78: #{tpu_custom_call.1} parent=5 // pred_check_branch
        %1611 = sbr.rel (%p1609) target = $region80
      $region79: #{tpu_custom_call.1} parent=5 // pred_region
        %s1612 = ssub.s32 %s18, 2
      $region80: #{tpu_custom_call.1} parent=5 // pred_fallthru
        _
    $region6: #{tpu_custom_call.1} parent=1 // loop_footer
      %s22 = sadd.s32 1, %s18
    $region7: #{tpu_custom_call.1} parent=1 // loop_footer_branch
      %17 = sbr.rel target = $region3
    $region8: #{tpu_custom_call.1} parent=1 // loop_exit
      _
    %1613 = vsyncpa [#allocation6], 1
    %s1614 = scalar_lea.sflag [#allocation6], 1
    %1615 = vsyncpa %s1614, 1
    %1616 = vsyncpa [#allocation9], 1
    %1617 = vsyncpa [#allocation12], 1
    %1618 = vsyncpa [#allocation7], 1
    %s1619 = scalar_lea.sflag [#allocation7], 1
    %1620 = vsyncpa %s1619, 1

</llo_original>
